<compile_context>
chip_gen: v7x
topology: tpu7x:2x2x1
jax: 0.10.0
libtpu: 0.0.40
codegen_flags: <defaults>
</compile_context>

<pallas_src>
import jax
import jax.numpy as jnp
from jax.experimental import pallas as pl
from jax.experimental.pallas import tpu as pltpu


def _same_pad(in_dim, out_dim, kernel_size, stride):
    """Mirror of compute_padding() in the PyTorch code."""
    p = max(0, (out_dim - 1) * stride + kernel_size - in_dim)
    pad_left = p // 2
    return pad_left, p - pad_left


def _make_kernel(NB, L, C_in, C_out, K, stride, downsample):
    L1 = (L + stride - 1) // stride            # conv1 / maxpool output length
    p1l, p1r = _same_pad(L, L1, K, stride)     # conv1 SAME padding
    p2l, p2r = _same_pad(L1, L1, K, 1)         # conv2 SAME padding (stride 1)
    ppl, ppr = _same_pad(L, L, stride, 1)      # maxpool SAME padding
    Lp1 = L + p1l + p1r
    Lp2 = L1 + p2l + p2r
    Lpp = L + ppl + ppr

    def kernel(x_ref, bn1s_ref, bn1b_ref, w1_ref, b1_ref,
               bn2s_ref, bn2b_ref, w2_ref, b2_ref,
               o_ref, xpad_ref, im1_ref, hpad_ref, im2_ref, idpad_ref):
        # Zero ONLY the pad rows, once per grid step.  Interior rows are fully
        # rewritten for every sample, pad rows are never written again, and the
        # step is self-contained (safe for "parallel" megacore sharding).
        if p1l:
            xpad_ref[:p1l, :] = jnp.zeros((p1l, C_in), jnp.float32)
        if p1r:
            xpad_ref[p1l + L:, :] = jnp.zeros((p1r, C_in), jnp.float32)
        if p2l:
            hpad_ref[:p2l, :] = jnp.zeros((p2l, C_out), jnp.float32)
        if p2r:
            hpad_ref[p2l + L1:, :] = jnp.zeros((p2r, C_out), jnp.float32)
        if downsample:
            if ppl:
                idpad_ref[:ppl, :] = jnp.zeros((ppl, C_in), jnp.float32)
            if ppr:
                idpad_ref[ppl + L:, :] = jnp.zeros((ppr, C_in), jnp.float32)

        bn1s = bn1s_ref[...]; bn1b = bn1b_ref[...]       # (1, C_in)
        bn2s = bn2s_ref[...]; bn2b = bn2b_ref[...]       # (1, C_out)
        w1 = w1_ref[...]; b1 = b1_ref[...]               # (K*C_in, C_out), (1, C_out)
        w2 = w2_ref[...]; b2 = b2_ref[...]               # (K*C_out, C_out), (1, C_out)

        for n in range(NB):                              # unrolled batch block
            x_cl = x_ref[n]                              # (C_in, L)  lane-dense load
            x_lc = jnp.transpose(x_cl)                   # (L, C_in)  XLU transpose

            # --- bn1 (eval, folded scale/bias) + relu1
            # TODO(synk): training-mode Dropout(p=0.5) not implemented (eval
            #             identity); would use pltpu.prng_seed/prng_random_bits.
            a = jnp.maximum(x_lc * bn1s + bn1b, 0.0)

            # --- conv1: SAME zero-pad (after activation, as in torch), stride.
            # Single fused im2col matmul (contraction K*C_in) instead of K taps.
            xpad_ref[pl.ds(p1l, L), :] = a
            for t in range(K):
                im1_ref[:, t * C_in:(t + 1) * C_in] = (
                    xpad_ref[pl.ds(t, L1, stride=stride), :])
            y1 = jnp.dot(im1_ref[...], w1,
                         preferred_element_type=jnp.float32) + b1   # (L1, C_out)

            # --- bn2 (eval) + relu2 (dropout = identity)
            h = jnp.maximum(y1 * bn2s + bn2b, 0.0)

            # --- conv2: SAME zero-pad, stride 1, single im2col matmul.
            hpad_ref[pl.ds(p2l, L1), :] = h
            for t in range(K):
                im2_ref[:, t * C_out:(t + 1) * C_out] = hpad_ref[pl.ds(t, L1), :]
            y2 = jnp.dot(im2_ref[...], w2,
                         preferred_element_type=jnp.float32) + b2   # (L1, C_out)

            # --- identity path
            if downsample:
                # MyMaxPool1dPadSame: zero padding participates in the max
                # (matches torch F.pad + MaxPool1d).
                idpad_ref[pl.ds(ppl, L), :] = x_lc
                ident = idpad_ref[pl.ds(0, L1, stride=stride), :]
                for t in range(1, stride):
                    ident = jnp.maximum(
                        ident, idpad_ref[pl.ds(t, L1, stride=stride), :])
            else:
                ident = x_lc                              # stride == 1 guaranteed

            # --- residual add, stored directly in NCL (no wrapper transpose).
            o_ref[n] = jnp.transpose(y2 + ident)          # (C_out, L1)

    return kernel, L1, (Lp1, Lp2, Lpp)


def basic_block_forward(x_ncl, params, *, kernel_size, stride, downsample,
                        batch_block=8):
    """x_ncl: (N, C_in, L) float32 (PyTorch NCL).  Returns (N, C_out, L1) NCL."""
    N, C_in, L = x_ncl.shape
    K = kernel_size
    C_out = params["w1"].shape[2]
    # Faithful to the PyTorch module: the residual add needs matching channels
    # (the channel-pad branch in the original can never fire), and stride > 1
    # only makes sense with downsample=True.
    assert C_in == C_out, "BasicBlock residual add requires in_channels == out_channels"
    assert downsample or stride == 1, "stride > 1 requires downsample=True"

    NB = min(N, batch_block)
    G = -(-N // NB)
    Npad = G * NB
    x = x_ncl.astype(jnp.float32)
    if Npad != N:
        x = jnp.pad(x, ((0, Npad - N), (0, 0), (0, 0)))

    kernel, L1, (Lp1, Lp2, Lpp) = _make_kernel(NB, L, C_in, C_out, K, stride,
                                               downsample)

    # Fold the K taps into the contraction dimension for the fused matmuls.
    w1_mat = params["w1"].reshape(K * C_in, C_out)     # rows ordered (t, c_in)
    w2_mat = params["w2"].reshape(K * C_out, C_out)

    def full_spec(a):
        nd = a.ndim
        return pl.BlockSpec(a.shape, lambda g, _nd=nd: (0,) * _nd)

    grid_spec = pltpu.PrefetchScalarGridSpec(
        num_scalar_prefetch=0,
        grid=(G,),
        in_specs=[
            pl.BlockSpec((NB, C_in, L), lambda g: (g, 0, 0)),   # NCL, lane-dense
            full_spec(params["bn1_scale"]), full_spec(params["bn1_bias"]),
            full_spec(w1_mat), full_spec(params["b1"]),
            full_spec(params["bn2_scale"]), full_spec(params["bn2_bias"]),
            full_spec(w2_mat), full_spec(params["b2"]),
        ],
        out_specs=pl.BlockSpec((NB, C_out, L1), lambda g: (g, 0, 0)),
        scratch_shapes=[
            pltpu.VMEM((Lp1, C_in), jnp.float32),        # conv1 padded acts
            pltpu.VMEM((L1, K * C_in), jnp.float32),     # conv1 im2col slab
            pltpu.VMEM((Lp2, C_out), jnp.float32),       # conv2 padded acts
            pltpu.VMEM((L1, K * C_out), jnp.float32),    # conv2 im2col slab
            pltpu.VMEM((Lpp, C_in), jnp.float32),        # maxpool padded identity
        ],
    )

    out = pl.pallas_call(
        kernel,
        out_shape=jax.ShapeDtypeStruct((Npad, C_out, L1), jnp.float32),
        grid_spec=grid_spec,
        compiler_params=pltpu.CompilerParams(
            dimension_semantics=("parallel",)),          # batch blocks independent
    )(x, params["bn1_scale"], params["bn1_bias"], w1_mat, params["b1"],
      params["bn2_scale"], params["bn2_bias"], w2_mat, params["b2"])

    return out[:N] if Npad != N else out


def reference_forward(x_ncl, params, *, kernel_size, stride, downsample):
    """Pure-JAX mirror of the PyTorch forward (eval mode) for a sanity check."""
    x = jnp.transpose(x_ncl, (0, 2, 1)).astype(jnp.float32)    # NLC
    N, L, C_in = x.shape
    K = kernel_size
    C_out = params["w1"].shape[2]
    L1 = (L + stride - 1) // stride

    a = jnp.maximum(x * params["bn1_scale"] + params["bn1_bias"], 0.0)
    p1l, p1r = _same_pad(L, L1, K, stride)
    ap = jnp.pad(a, ((0, 0), (p1l, p1r), (0, 0)))
    y = jnp.zeros((N, L1, C_out), jnp.float32) + params["b1"]
    for t in range(K):
        xt = ap[:, t::stride, :][:, :L1, :]
        y = y + jnp.einsum("nlc,cd->nld", xt, params["w1"][t])

    h = jnp.maximum(y * params["bn2_scale"] + params["bn2_bias"], 0.0)
    p2l, p2r = _same_pad(L1, L1, K, 1)
    hp = jnp.pad(h, ((0, 0), (p2l, p2r), (0, 0)))
    y2 = jnp.zeros((N, L1, C_out), jnp.float32) + params["b2"]
    for t in range(K):
        y2 = y2 + jnp.einsum("nlc,cd->nld", hp[:, t:t + L1, :], params["w2"][t])

    if downsample:
        ppl, ppr = _same_pad(L, L, stride, 1)
        xp = jnp.pad(x, ((0, 0), (ppl, ppr), (0, 0)))
        ident = xp[:, 0::stride, :][:, :L1, :]
        for t in range(1, stride):
            ident = jnp.maximum(ident, xp[:, t::stride, :][:, :L1, :])
    else:
        ident = x

    return jnp.transpose(y2 + ident, (0, 2, 1))


def init_params(key, C_in, C_out, K, eps=1e-5):
    """Deterministic synthetic parameters matching the module's shapes."""
    ks = jax.random.split(key, 12)
    g1 = 1.0 + 0.1 * jax.random.normal(ks[0], (C_in,))
    be1 = 0.1 * jax.random.normal(ks[1], (C_in,))
    m1 = 0.1 * jax.random.normal(ks[2], (C_in,))
    v1 = jax.random.uniform(ks[3], (C_in,), minval=0.5, maxval=1.5)
    g2 = 1.0 + 0.1 * jax.random.normal(ks[4], (C_out,))
    be2 = 0.1 * jax.random.normal(ks[5], (C_out,))
    m2 = 0.1 * jax.random.normal(ks[6], (C_out,))
    v2 = jax.random.uniform(ks[7], (C_out,), minval=0.5, maxval=1.5)
    # Conv1d weights (torch layout (C_out, C_in, K)) -> kernel layout (K, C_in, C_out)
    w1_oik = jax.random.normal(ks[8], (C_out, C_in, K)) * (1.0 / (C_in * K) ** 0.5)
    w2_oik = jax.random.normal(ks[9], (C_out, C_out, K)) * (1.0 / (C_out * K) ** 0.5)
    cb1 = 0.05 * jax.random.normal(ks[10], (C_out,))
    cb2 = 0.05 * jax.random.normal(ks[11], (C_out,))

    s1 = g1 / jnp.sqrt(v1 + eps)
    s2 = g2 / jnp.sqrt(v2 + eps)
    f32 = lambda a: a.astype(jnp.float32)
    return {
        "bn1_scale": f32(s1).reshape(1, C_in),
        "bn1_bias": f32(be1 - m1 * s1).reshape(1, C_in),
        "bn2_scale": f32(s2).reshape(1, C_out),
        "bn2_bias": f32(be2 - m2 * s2).reshape(1, C_out),
        "w1": f32(jnp.transpose(w1_oik, (2, 1, 0))),   # (K, C_in, C_out)
        "b1": f32(cb1).reshape(1, C_out),
        "w2": f32(jnp.transpose(w2_oik, (2, 1, 0))),   # (K, C_out, C_out)
        "b2": f32(cb2).reshape(1, C_out),
    }


if __name__ == "__main__":
    N, C, L = 2, 8, 128
    key = jax.random.PRNGKey(0)
    kp, kx = jax.random.split(key)
    x = jax.random.normal(kx, (N, C, L), dtype=jnp.float32)      # NCL, like PyTorch

    for (kernel_size, stride, downsample) in [(5, 2, True), (5, 1, False)]:
        params = init_params(kp, C, C, kernel_size)
        out = basic_block_forward(x, params, kernel_size=kernel_size,
                                  stride=stride, downsample=downsample)
        out = jax.block_until_ready(out)
        ref = reference_forward(x, params, kernel_size=kernel_size,
                                stride=stride, downsample=downsample)
        L1 = (L + stride - 1) // stride
        assert out.shape == (N, C, L1), out.shape
        assert jnp.allclose(out, ref, atol=1e-4, rtol=1e-4), \
            f"Pallas output mismatch vs JAX reference (stride={stride})"
    print("KERNEL_OK")
</pallas_src>

<mosaic_0001>
module attributes {stable_mosaic.version = 11 : i64} {
  func.func @kernel(%arg0: i32, %arg1: memref<2x8x128xf32, #tpu.memory_space<vmem>>, %arg2: memref<1x8xf32, #tpu.memory_space<vmem>>, %arg3: memref<1x8xf32, #tpu.memory_space<vmem>>, %arg4: memref<40x8xf32, #tpu.memory_space<vmem>>, %arg5: memref<1x8xf32, #tpu.memory_space<vmem>>, %arg6: memref<1x8xf32, #tpu.memory_space<vmem>>, %arg7: memref<1x8xf32, #tpu.memory_space<vmem>>, %arg8: memref<40x8xf32, #tpu.memory_space<vmem>>, %arg9: memref<1x8xf32, #tpu.memory_space<vmem>>, %arg10: memref<2x8x64xf32, #tpu.memory_space<vmem>>, %arg11: memref<131x8xf32, #tpu.memory_space<vmem>>, %arg12: memref<64x40xf32, #tpu.memory_space<vmem>>, %arg13: memref<68x8xf32, #tpu.memory_space<vmem>>, %arg14: memref<64x40xf32, #tpu.memory_space<vmem>>, %arg15: memref<129x8xf32, #tpu.memory_space<vmem>>) attributes {dimension_semantics = [#tpu.dimension_semantics<parallel>], iteration_bounds = array<i64: 1>, scalar_prefetch = 0 : i64, scratch_operands = 5 : i64, tpu.core_type = #tpu.core_type<tc>, window_params = [{transform_indices = @transform_0, window_bounds = array<i64: 2, 8, 128>}, {pipeline_mode = #tpu.pipeline_mode<synchronous>, transform_indices = @transform_1, window_bounds = array<i64: 1, 8>}, {pipeline_mode = #tpu.pipeline_mode<synchronous>, transform_indices = @transform_2, window_bounds = array<i64: 1, 8>}, {pipeline_mode = #tpu.pipeline_mode<synchronous>, transform_indices = @transform_3, window_bounds = array<i64: 40, 8>}, {pipeline_mode = #tpu.pipeline_mode<synchronous>, transform_indices = @transform_4, window_bounds = array<i64: 1, 8>}, {pipeline_mode = #tpu.pipeline_mode<synchronous>, transform_indices = @transform_5, window_bounds = array<i64: 1, 8>}, {pipeline_mode = #tpu.pipeline_mode<synchronous>, transform_indices = @transform_6, window_bounds = array<i64: 1, 8>}, {pipeline_mode = #tpu.pipeline_mode<synchronous>, transform_indices = @transform_7, window_bounds = array<i64: 40, 8>}, {pipeline_mode = #tpu.pipeline_mode<synchronous>, transform_indices = @transform_8, window_bounds = array<i64: 1, 8>}, {transform_indices = @transform_9, window_bounds = array<i64: 2, 8, 64>}]} {
    %cst = arith.constant 0.000000e+00 : f32
    %0 = vector.broadcast %cst : f32 to vector<1x8xf32>
    %c0 = arith.constant 0 : index
    %c0_0 = arith.constant 0 : index
    %1 = vector.load %arg11[%c0, %c0_0] : memref<131x8xf32, #tpu.memory_space<vmem>>, vector<1x8xf32>
    tpu.vector_store %arg11[%c0, %c0_0], %0 {strides = array<i32>} : memref<131x8xf32, #tpu.memory_space<vmem>>, vector<1x8xf32>,
    %cst_1 = arith.constant 0.000000e+00 : f32
    %2 = vector.broadcast %cst_1 : f32 to vector<2x8xf32>
    %c129 = arith.constant 129 : index
    %c0_2 = arith.constant 0 : index
    %3 = vector.load %arg11[%c129, %c0_2] : memref<131x8xf32, #tpu.memory_space<vmem>>, vector<2x8xf32>
    tpu.vector_store %arg11[%c129, %c0_2], %2 {strides = array<i32>} : memref<131x8xf32, #tpu.memory_space<vmem>>, vector<2x8xf32>,
    %cst_3 = arith.constant 0.000000e+00 : f32
    %4 = vector.broadcast %cst_3 : f32 to vector<2x8xf32>
    %c0_4 = arith.constant 0 : index
    %c0_5 = arith.constant 0 : index
    %5 = vector.load %arg13[%c0_4, %c0_5] : memref<68x8xf32, #tpu.memory_space<vmem>>, vector<2x8xf32>
    tpu.vector_store %arg13[%c0_4, %c0_5], %4 {strides = array<i32>} : memref<68x8xf32, #tpu.memory_space<vmem>>, vector<2x8xf32>,
    %cst_6 = arith.constant 0.000000e+00 : f32
    %6 = vector.broadcast %cst_6 : f32 to vector<2x8xf32>
    %c66 = arith.constant 66 : index
    %c0_7 = arith.constant 0 : index
    %7 = vector.load %arg13[%c66, %c0_7] : memref<68x8xf32, #tpu.memory_space<vmem>>, vector<2x8xf32>
    tpu.vector_store %arg13[%c66, %c0_7], %6 {strides = array<i32>} : memref<68x8xf32, #tpu.memory_space<vmem>>, vector<2x8xf32>,
    %cst_8 = arith.constant 0.000000e+00 : f32
    %8 = vector.broadcast %cst_8 : f32 to vector<1x8xf32>
    %c128 = arith.constant 128 : index
    %c0_9 = arith.constant 0 : index
    %9 = vector.load %arg15[%c128, %c0_9] : memref<129x8xf32, #tpu.memory_space<vmem>>, vector<1x8xf32>
    tpu.vector_store %arg15[%c128, %c0_9], %8 {strides = array<i32>} : memref<129x8xf32, #tpu.memory_space<vmem>>, vector<1x8xf32>,
    %c0_10 = arith.constant 0 : index
    %c0_11 = arith.constant 0 : index
    %10 = vector.load %arg2[%c0_10, %c0_11] : memref<1x8xf32, #tpu.memory_space<vmem>>, vector<1x8xf32>
    %c0_12 = arith.constant 0 : index
    %c0_13 = arith.constant 0 : index
    %11 = vector.load %arg3[%c0_12, %c0_13] : memref<1x8xf32, #tpu.memory_space<vmem>>, vector<1x8xf32>
    %c0_14 = arith.constant 0 : index
    %c0_15 = arith.constant 0 : index
    %12 = vector.load %arg6[%c0_14, %c0_15] : memref<1x8xf32, #tpu.memory_space<vmem>>, vector<1x8xf32>
    %c0_16 = arith.constant 0 : index
    %c0_17 = arith.constant 0 : index
    %13 = vector.load %arg7[%c0_16, %c0_17] : memref<1x8xf32, #tpu.memory_space<vmem>>, vector<1x8xf32>
    %c0_18 = arith.constant 0 : index
    %c0_19 = arith.constant 0 : index
    %14 = vector.load %arg4[%c0_18, %c0_19] : memref<40x8xf32, #tpu.memory_space<vmem>>, vector<40x8xf32>
    %c0_20 = arith.constant 0 : index
    %c0_21 = arith.constant 0 : index
    %15 = vector.load %arg5[%c0_20, %c0_21] : memref<1x8xf32, #tpu.memory_space<vmem>>, vector<1x8xf32>
    %c0_22 = arith.constant 0 : index
    %c0_23 = arith.constant 0 : index
    %16 = vector.load %arg8[%c0_22, %c0_23] : memref<40x8xf32, #tpu.memory_space<vmem>>, vector<40x8xf32>
    %c0_24 = arith.constant 0 : index
    %c0_25 = arith.constant 0 : index
    %17 = vector.load %arg9[%c0_24, %c0_25] : memref<1x8xf32, #tpu.memory_space<vmem>>, vector<1x8xf32>
    %c0_26 = arith.constant 0 : index
    %c0_27 = arith.constant 0 : index
    %c0_28 = arith.constant 0 : index
    %18 = vector.load %arg1[%c0_26, %c0_27, %c0_28] : memref<2x8x128xf32, #tpu.memory_space<vmem>>, vector<1x8x128xf32>
    %19 = vector.shape_cast %18 : vector<1x8x128xf32> to vector<8x128xf32>
    %20 = tpu.transpose %19, [1, 0] : vector<8x128xf32> -> vector<128x8xf32>
    %21 = vector.broadcast %10 : vector<1x8xf32> to vector<128x8xf32>
    %22 = arith.mulf %20, %21 : vector<128x8xf32>
    %23 = vector.broadcast %11 : vector<1x8xf32> to vector<128x8xf32>
    %24 = arith.addf %22, %23 : vector<128x8xf32>
    %cst_29 = arith.constant 0.000000e+00 : f32
    %25 = vector.broadcast %cst_29 : f32 to vector<128x8xf32>
    %26 = arith.maximumf %24, %25 : vector<128x8xf32>
    %c1 = arith.constant 1 : index
    %c0_30 = arith.constant 0 : index
    %27 = vector.load %arg11[%c1, %c0_30] : memref<131x8xf32, #tpu.memory_space<vmem>>, vector<128x8xf32>
    tpu.vector_store %arg11[%c1, %c0_30], %26 {strides = array<i32>} : memref<131x8xf32, #tpu.memory_space<vmem>>, vector<128x8xf32>,
    %c0_31 = arith.constant 0 : index
    %c0_32 = arith.constant 0 : index
    %28 = tpu.strided_load %arg11[%c0_31, %c0_32] {strides = array<i32: 2, 1>} : memref<131x8xf32, #tpu.memory_space<vmem>>, vector<64x8xf32>
    %c0_33 = arith.constant 0 : index
    %c0_34 = arith.constant 0 : index
    %29 = vector.load %arg12[%c0_33, %c0_34] : memref<64x40xf32, #tpu.memory_space<vmem>>, vector<64x8xf32>
    tpu.vector_store %arg12[%c0_33, %c0_34], %28 {strides = array<i32>} : memref<64x40xf32, #tpu.memory_space<vmem>>, vector<64x8xf32>,
    %c1_35 = arith.constant 1 : index
    %c0_36 = arith.constant 0 : index
    %30 = tpu.strided_load %arg11[%c1_35, %c0_36] {strides = array<i32: 2, 1>} : memref<131x8xf32, #tpu.memory_space<vmem>>, vector<64x8xf32>
    %c0_37 = arith.constant 0 : index
    %c8 = arith.constant 8 : index
    %31 = vector.load %arg12[%c0_37, %c8] : memref<64x40xf32, #tpu.memory_space<vmem>>, vector<64x8xf32>
    tpu.vector_store %arg12[%c0_37, %c8], %30 {strides = array<i32>} : memref<64x40xf32, #tpu.memory_space<vmem>>, vector<64x8xf32>,
    %c2 = arith.constant 2 : index
    %c0_38 = arith.constant 0 : index
    %32 = tpu.strided_load %arg11[%c2, %c0_38] {strides = array<i32: 2, 1>} : memref<131x8xf32, #tpu.memory_space<vmem>>, vector<64x8xf32>
    %c0_39 = arith.constant 0 : index
    %c16 = arith.constant 16 : index
    %33 = vector.load %arg12[%c0_39, %c16] : memref<64x40xf32, #tpu.memory_space<vmem>>, vector<64x8xf32>
    tpu.vector_store %arg12[%c0_39, %c16], %32 {strides = array<i32>} : memref<64x40xf32, #tpu.memory_space<vmem>>, vector<64x8xf32>,
    %c3 = arith.constant 3 : index
    %c0_40 = arith.constant 0 : index
    %34 = tpu.strided_load %arg11[%c3, %c0_40] {strides = array<i32: 2, 1>} : memref<131x8xf32, #tpu.memory_space<vmem>>, vector<64x8xf32>
    %c0_41 = arith.constant 0 : index
    %c24 = arith.constant 24 : index
    %35 = vector.load %arg12[%c0_41, %c24] : memref<64x40xf32, #tpu.memory_space<vmem>>, vector<64x8xf32>
    tpu.vector_store %arg12[%c0_41, %c24], %34 {strides = array<i32>} : memref<64x40xf32, #tpu.memory_space<vmem>>, vector<64x8xf32>,
    %c4 = arith.constant 4 : index
    %c0_42 = arith.constant 0 : index
    %36 = tpu.strided_load %arg11[%c4, %c0_42] {strides = array<i32: 2, 1>} : memref<131x8xf32, #tpu.memory_space<vmem>>, vector<64x8xf32>
    %c0_43 = arith.constant 0 : index
    %c32 = arith.constant 32 : index
    %37 = vector.load %arg12[%c0_43, %c32] : memref<64x40xf32, #tpu.memory_space<vmem>>, vector<64x8xf32>
    tpu.vector_store %arg12[%c0_43, %c32], %36 {strides = array<i32>} : memref<64x40xf32, #tpu.memory_space<vmem>>, vector<64x8xf32>,
    %c0_44 = arith.constant 0 : index
    %c0_45 = arith.constant 0 : index
    %38 = vector.load %arg12[%c0_44, %c0_45] : memref<64x40xf32, #tpu.memory_space<vmem>>, vector<64x40xf32>
    %cst_46 = arith.constant dense<0.000000e+00> : vector<64x8xf32>
    %39 = tpu.matmul %38, %14, %cst_46 {dimension_numbers = #tpu.dot_dimension_numbers<[1], [0], [0], [1], [0, 0, 1, 1], [], []>} : vector<64x40xf32>, vector<40x8xf32>, vector<64x8xf32> -> vector<64x8xf32>
    %40 = vector.broadcast %15 : vector<1x8xf32> to vector<64x8xf32>
    %41 = arith.addf %39, %40 : vector<64x8xf32>
    %42 = vector.broadcast %12 : vector<1x8xf32> to vector<64x8xf32>
    %43 = arith.mulf %41, %42 : vector<64x8xf32>
    %44 = vector.broadcast %13 : vector<1x8xf32> to vector<64x8xf32>
    %45 = arith.addf %43, %44 : vector<64x8xf32>
    %cst_47 = arith.constant 0.000000e+00 : f32
    %46 = vector.broadcast %cst_47 : f32 to vector<64x8xf32>
    %47 = arith.maximumf %45, %46 : vector<64x8xf32>
    %c2_48 = arith.constant 2 : index
    %c0_49 = arith.constant 0 : index
    %48 = vector.load %arg13[%c2_48, %c0_49] : memref<68x8xf32, #tpu.memory_space<vmem>>, vector<64x8xf32>
    tpu.vector_store %arg13[%c2_48, %c0_49], %47 {strides = array<i32>} : memref<68x8xf32, #tpu.memory_space<vmem>>, vector<64x8xf32>,
    %c0_50 = arith.constant 0 : index
    %c0_51 = arith.constant 0 : index
    %49 = vector.load %arg13[%c0_50, %c0_51] : memref<68x8xf32, #tpu.memory_space<vmem>>, vector<64x8xf32>
    %c0_52 = arith.constant 0 : index
    %c0_53 = arith.constant 0 : index
    %50 = vector.load %arg14[%c0_52, %c0_53] : memref<64x40xf32, #tpu.memory_space<vmem>>, vector<64x8xf32>
    tpu.vector_store %arg14[%c0_52, %c0_53], %49 {strides = array<i32>} : memref<64x40xf32, #tpu.memory_space<vmem>>, vector<64x8xf32>,
    %c1_54 = arith.constant 1 : index
    %c0_55 = arith.constant 0 : index
    %51 = vector.load %arg13[%c1_54, %c0_55] : memref<68x8xf32, #tpu.memory_space<vmem>>, vector<64x8xf32>
    %c0_56 = arith.constant 0 : index
    %c8_57 = arith.constant 8 : index
    %52 = vector.load %arg14[%c0_56, %c8_57] : memref<64x40xf32, #tpu.memory_space<vmem>>, vector<64x8xf32>
    tpu.vector_store %arg14[%c0_56, %c8_57], %51 {strides = array<i32>} : memref<64x40xf32, #tpu.memory_space<vmem>>, vector<64x8xf32>,
    %c2_58 = arith.constant 2 : index
    %c0_59 = arith.constant 0 : index
    %53 = vector.load %arg13[%c2_58, %c0_59] : memref<68x8xf32, #tpu.memory_space<vmem>>, vector<64x8xf32>
    %c0_60 = arith.constant 0 : index
    %c16_61 = arith.constant 16 : index
    %54 = vector.load %arg14[%c0_60, %c16_61] : memref<64x40xf32, #tpu.memory_space<vmem>>, vector<64x8xf32>
    tpu.vector_store %arg14[%c0_60, %c16_61], %53 {strides = array<i32>} : memref<64x40xf32, #tpu.memory_space<vmem>>, vector<64x8xf32>,
    %c3_62 = arith.constant 3 : index
    %c0_63 = arith.constant 0 : index
    %55 = vector.load %arg13[%c3_62, %c0_63] : memref<68x8xf32, #tpu.memory_space<vmem>>, vector<64x8xf32>
    %c0_64 = arith.constant 0 : index
    %c24_65 = arith.constant 24 : index
    %56 = vector.load %arg14[%c0_64, %c24_65] : memref<64x40xf32, #tpu.memory_space<vmem>>, vector<64x8xf32>
    tpu.vector_store %arg14[%c0_64, %c24_65], %55 {strides = array<i32>} : memref<64x40xf32, #tpu.memory_space<vmem>>, vector<64x8xf32>,
    %c4_66 = arith.constant 4 : index
    %c0_67 = arith.constant 0 : index
    %57 = vector.load %arg13[%c4_66, %c0_67] : memref<68x8xf32, #tpu.memory_space<vmem>>, vector<64x8xf32>
    %c0_68 = arith.constant 0 : index
    %c32_69 = arith.constant 32 : index
    %58 = vector.load %arg14[%c0_68, %c32_69] : memref<64x40xf32, #tpu.memory_space<vmem>>, vector<64x8xf32>
    tpu.vector_store %arg14[%c0_68, %c32_69], %57 {strides = array<i32>} : memref<64x40xf32, #tpu.memory_space<vmem>>, vector<64x8xf32>,
    %c0_70 = arith.constant 0 : index
    %c0_71 = arith.constant 0 : index
    %59 = vector.load %arg14[%c0_70, %c0_71] : memref<64x40xf32, #tpu.memory_space<vmem>>, vector<64x40xf32>
    %cst_72 = arith.constant dense<0.000000e+00> : vector<64x8xf32>
    %60 = tpu.matmul %59, %16, %cst_72 {dimension_numbers = #tpu.dot_dimension_numbers<[1], [0], [0], [1], [0, 0, 1, 1], [], []>} : vector<64x40xf32>, vector<40x8xf32>, vector<64x8xf32> -> vector<64x8xf32>
    %61 = vector.broadcast %17 : vector<1x8xf32> to vector<64x8xf32>
    %62 = arith.addf %60, %61 : vector<64x8xf32>
    %c0_73 = arith.constant 0 : index
    %c0_74 = arith.constant 0 : index
    %63 = vector.load %arg15[%c0_73, %c0_74] : memref<129x8xf32, #tpu.memory_space<vmem>>, vector<128x8xf32>
    tpu.vector_store %arg15[%c0_73, %c0_74], %20 {strides = array<i32>} : memref<129x8xf32, #tpu.memory_space<vmem>>, vector<128x8xf32>,
    %c0_75 = arith.constant 0 : index
    %c0_76 = arith.constant 0 : index
    %64 = tpu.strided_load %arg15[%c0_75, %c0_76] {strides = array<i32: 2, 1>} : memref<129x8xf32, #tpu.memory_space<vmem>>, vector<64x8xf32>
    %c1_77 = arith.constant 1 : index
    %c0_78 = arith.constant 0 : index
    %65 = tpu.strided_load %arg15[%c1_77, %c0_78] {strides = array<i32: 2, 1>} : memref<129x8xf32, #tpu.memory_space<vmem>>, vector<64x8xf32>
    %66 = arith.maximumf %64, %65 : vector<64x8xf32>
    %67 = arith.addf %62, %66 : vector<64x8xf32>
    %68 = tpu.transpose %67, [1, 0] : vector<64x8xf32> -> vector<8x64xf32>
    %c0_79 = arith.constant 0 : index
    %c0_80 = arith.constant 0 : index
    %c0_81 = arith.constant 0 : index
    %69 = vector.load %arg10[%c0_79, %c0_80, %c0_81] : memref<2x8x64xf32, #tpu.memory_space<vmem>>, vector<1x8x64xf32>
    %70 = vector.shape_cast %69 : vector<1x8x64xf32> to vector<8x64xf32>
    %71 = vector.shape_cast %68 : vector<8x64xf32> to vector<1x8x64xf32>
    tpu.vector_store %arg10[%c0_79, %c0_80, %c0_81], %71 {strides = array<i32>} : memref<2x8x64xf32, #tpu.memory_space<vmem>>, vector<1x8x64xf32>,
    %c1_82 = arith.constant 1 : index
    %c0_83 = arith.constant 0 : index
    %c0_84 = arith.constant 0 : index
    %72 = vector.load %arg1[%c1_82, %c0_83, %c0_84] : memref<2x8x128xf32, #tpu.memory_space<vmem>>, vector<1x8x128xf32>
    %73 = vector.shape_cast %72 : vector<1x8x128xf32> to vector<8x128xf32>
    %74 = tpu.transpose %73, [1, 0] : vector<8x128xf32> -> vector<128x8xf32>
    %75 = vector.broadcast %10 : vector<1x8xf32> to vector<128x8xf32>
    %76 = arith.mulf %74, %75 : vector<128x8xf32>
    %77 = vector.broadcast %11 : vector<1x8xf32> to vector<128x8xf32>
    %78 = arith.addf %76, %77 : vector<128x8xf32>
    %cst_85 = arith.constant 0.000000e+00 : f32
    %79 = vector.broadcast %cst_85 : f32 to vector<128x8xf32>
    %80 = arith.maximumf %78, %79 : vector<128x8xf32>
    %c1_86 = arith.constant 1 : index
    %c0_87 = arith.constant 0 : index
    %81 = vector.load %arg11[%c1_86, %c0_87] : memref<131x8xf32, #tpu.memory_space<vmem>>, vector<128x8xf32>
    tpu.vector_store %arg11[%c1_86, %c0_87], %80 {strides = array<i32>} : memref<131x8xf32, #tpu.memory_space<vmem>>, vector<128x8xf32>,
    %c0_88 = arith.constant 0 : index
    %c0_89 = arith.constant 0 : index
    %82 = tpu.strided_load %arg11[%c0_88, %c0_89] {strides = array<i32: 2, 1>} : memref<131x8xf32, #tpu.memory_space<vmem>>, vector<64x8xf32>
    %c0_90 = arith.constant 0 : index
    %c0_91 = arith.constant 0 : index
    %83 = vector.load %arg12[%c0_90, %c0_91] : memref<64x40xf32, #tpu.memory_space<vmem>>, vector<64x8xf32>
    tpu.vector_store %arg12[%c0_90, %c0_91], %82 {strides = array<i32>} : memref<64x40xf32, #tpu.memory_space<vmem>>, vector<64x8xf32>,
    %c1_92 = arith.constant 1 : index
    %c0_93 = arith.constant 0 : index
    %84 = tpu.strided_load %arg11[%c1_92, %c0_93] {strides = array<i32: 2, 1>} : memref<131x8xf32, #tpu.memory_space<vmem>>, vector<64x8xf32>
    %c0_94 = arith.constant 0 : index
    %c8_95 = arith.constant 8 : index
    %85 = vector.load %arg12[%c0_94, %c8_95] : memref<64x40xf32, #tpu.memory_space<vmem>>, vector<64x8xf32>
    tpu.vector_store %arg12[%c0_94, %c8_95], %84 {strides = array<i32>} : memref<64x40xf32, #tpu.memory_space<vmem>>, vector<64x8xf32>,
    %c2_96 = arith.constant 2 : index
    %c0_97 = arith.constant 0 : index
    %86 = tpu.strided_load %arg11[%c2_96, %c0_97] {strides = array<i32: 2, 1>} : memref<131x8xf32, #tpu.memory_space<vmem>>, vector<64x8xf32>
    %c0_98 = arith.constant 0 : index
    %c16_99 = arith.constant 16 : index
    %87 = vector.load %arg12[%c0_98, %c16_99] : memref<64x40xf32, #tpu.memory_space<vmem>>, vector<64x8xf32>
    tpu.vector_store %arg12[%c0_98, %c16_99], %86 {strides = array<i32>} : memref<64x40xf32, #tpu.memory_space<vmem>>, vector<64x8xf32>,
    %c3_100 = arith.constant 3 : index
    %c0_101 = arith.constant 0 : index
    %88 = tpu.strided_load %arg11[%c3_100, %c0_101] {strides = array<i32: 2, 1>} : memref<131x8xf32, #tpu.memory_space<vmem>>, vector<64x8xf32>
    %c0_102 = arith.constant 0 : index
    %c24_103 = arith.constant 24 : index
    %89 = vector.load %arg12[%c0_102, %c24_103] : memref<64x40xf32, #tpu.memory_space<vmem>>, vector<64x8xf32>
    tpu.vector_store %arg12[%c0_102, %c24_103], %88 {strides = array<i32>} : memref<64x40xf32, #tpu.memory_space<vmem>>, vector<64x8xf32>,
    %c4_104 = arith.constant 4 : index
    %c0_105 = arith.constant 0 : index
    %90 = tpu.strided_load %arg11[%c4_104, %c0_105] {strides = array<i32: 2, 1>} : memref<131x8xf32, #tpu.memory_space<vmem>>, vector<64x8xf32>
    %c0_106 = arith.constant 0 : index
    %c32_107 = arith.constant 32 : index
    %91 = vector.load %arg12[%c0_106, %c32_107] : memref<64x40xf32, #tpu.memory_space<vmem>>, vector<64x8xf32>
    tpu.vector_store %arg12[%c0_106, %c32_107], %90 {strides = array<i32>} : memref<64x40xf32, #tpu.memory_space<vmem>>, vector<64x8xf32>,
    %c0_108 = arith.constant 0 : index
    %c0_109 = arith.constant 0 : index
    %92 = vector.load %arg12[%c0_108, %c0_109] : memref<64x40xf32, #tpu.memory_space<vmem>>, vector<64x40xf32>
    %cst_110 = arith.constant dense<0.000000e+00> : vector<64x8xf32>
    %93 = tpu.matmul %92, %14, %cst_110 {dimension_numbers = #tpu.dot_dimension_numbers<[1], [0], [0], [1], [0, 0, 1, 1], [], []>} : vector<64x40xf32>, vector<40x8xf32>, vector<64x8xf32> -> vector<64x8xf32>
    %94 = vector.broadcast %15 : vector<1x8xf32> to vector<64x8xf32>
    %95 = arith.addf %93, %94 : vector<64x8xf32>
    %96 = vector.broadcast %12 : vector<1x8xf32> to vector<64x8xf32>
    %97 = arith.mulf %95, %96 : vector<64x8xf32>
    %98 = vector.broadcast %13 : vector<1x8xf32> to vector<64x8xf32>
    %99 = arith.addf %97, %98 : vector<64x8xf32>
    %cst_111 = arith.constant 0.000000e+00 : f32
    %100 = vector.broadcast %cst_111 : f32 to vector<64x8xf32>
    %101 = arith.maximumf %99, %100 : vector<64x8xf32>
    %c2_112 = arith.constant 2 : index
    %c0_113 = arith.constant 0 : index
    %102 = vector.load %arg13[%c2_112, %c0_113] : memref<68x8xf32, #tpu.memory_space<vmem>>, vector<64x8xf32>
    tpu.vector_store %arg13[%c2_112, %c0_113], %101 {strides = array<i32>} : memref<68x8xf32, #tpu.memory_space<vmem>>, vector<64x8xf32>,
    %c0_114 = arith.constant 0 : index
    %c0_115 = arith.constant 0 : index
    %103 = vector.load %arg13[%c0_114, %c0_115] : memref<68x8xf32, #tpu.memory_space<vmem>>, vector<64x8xf32>
    %c0_116 = arith.constant 0 : index
    %c0_117 = arith.constant 0 : index
    %104 = vector.load %arg14[%c0_116, %c0_117] : memref<64x40xf32, #tpu.memory_space<vmem>>, vector<64x8xf32>
    tpu.vector_store %arg14[%c0_116, %c0_117], %103 {strides = array<i32>} : memref<64x40xf32, #tpu.memory_space<vmem>>, vector<64x8xf32>,
    %c1_118 = arith.constant 1 : index
    %c0_119 = arith.constant 0 : index
    %105 = vector.load %arg13[%c1_118, %c0_119] : memref<68x8xf32, #tpu.memory_space<vmem>>, vector<64x8xf32>
    %c0_120 = arith.constant 0 : index
    %c8_121 = arith.constant 8 : index
    %106 = vector.load %arg14[%c0_120, %c8_121] : memref<64x40xf32, #tpu.memory_space<vmem>>, vector<64x8xf32>
    tpu.vector_store %arg14[%c0_120, %c8_121], %105 {strides = array<i32>} : memref<64x40xf32, #tpu.memory_space<vmem>>, vector<64x8xf32>,
    %c2_122 = arith.constant 2 : index
    %c0_123 = arith.constant 0 : index
    %107 = vector.load %arg13[%c2_122, %c0_123] : memref<68x8xf32, #tpu.memory_space<vmem>>, vector<64x8xf32>
    %c0_124 = arith.constant 0 : index
    %c16_125 = arith.constant 16 : index
    %108 = vector.load %arg14[%c0_124, %c16_125] : memref<64x40xf32, #tpu.memory_space<vmem>>, vector<64x8xf32>
    tpu.vector_store %arg14[%c0_124, %c16_125], %107 {strides = array<i32>} : memref<64x40xf32, #tpu.memory_space<vmem>>, vector<64x8xf32>,
    %c3_126 = arith.constant 3 : index
    %c0_127 = arith.constant 0 : index
    %109 = vector.load %arg13[%c3_126, %c0_127] : memref<68x8xf32, #tpu.memory_space<vmem>>, vector<64x8xf32>
    %c0_128 = arith.constant 0 : index
    %c24_129 = arith.constant 24 : index
    %110 = vector.load %arg14[%c0_128, %c24_129] : memref<64x40xf32, #tpu.memory_space<vmem>>, vector<64x8xf32>
    tpu.vector_store %arg14[%c0_128, %c24_129], %109 {strides = array<i32>} : memref<64x40xf32, #tpu.memory_space<vmem>>, vector<64x8xf32>,
    %c4_130 = arith.constant 4 : index
    %c0_131 = arith.constant 0 : index
    %111 = vector.load %arg13[%c4_130, %c0_131] : memref<68x8xf32, #tpu.memory_space<vmem>>, vector<64x8xf32>
    %c0_132 = arith.constant 0 : index
    %c32_133 = arith.constant 32 : index
    %112 = vector.load %arg14[%c0_132, %c32_133] : memref<64x40xf32, #tpu.memory_space<vmem>>, vector<64x8xf32>
    tpu.vector_store %arg14[%c0_132, %c32_133], %111 {strides = array<i32>} : memref<64x40xf32, #tpu.memory_space<vmem>>, vector<64x8xf32>,
    %c0_134 = arith.constant 0 : index
    %c0_135 = arith.constant 0 : index
    %113 = vector.load %arg14[%c0_134, %c0_135] : memref<64x40xf32, #tpu.memory_space<vmem>>, vector<64x40xf32>
    %cst_136 = arith.constant dense<0.000000e+00> : vector<64x8xf32>
    %114 = tpu.matmul %113, %16, %cst_136 {dimension_numbers = #tpu.dot_dimension_numbers<[1], [0], [0], [1], [0, 0, 1, 1], [], []>} : vector<64x40xf32>, vector<40x8xf32>, vector<64x8xf32> -> vector<64x8xf32>
    %115 = vector.broadcast %17 : vector<1x8xf32> to vector<64x8xf32>
    %116 = arith.addf %114, %115 : vector<64x8xf32>
    %c0_137 = arith.constant 0 : index
    %c0_138 = arith.constant 0 : index
    %117 = vector.load %arg15[%c0_137, %c0_138] : memref<129x8xf32, #tpu.memory_space<vmem>>, vector<128x8xf32>
    tpu.vector_store %arg15[%c0_137, %c0_138], %74 {strides = array<i32>} : memref<129x8xf32, #tpu.memory_space<vmem>>, vector<128x8xf32>,
    %c0_139 = arith.constant 0 : index
    %c0_140 = arith.constant 0 : index
    %118 = tpu.strided_load %arg15[%c0_139, %c0_140] {strides = array<i32: 2, 1>} : memref<129x8xf32, #tpu.memory_space<vmem>>, vector<64x8xf32>
    %c1_141 = arith.constant 1 : index
    %c0_142 = arith.constant 0 : index
    %119 = tpu.strided_load %arg15[%c1_141, %c0_142] {strides = array<i32: 2, 1>} : memref<129x8xf32, #tpu.memory_space<vmem>>, vector<64x8xf32>
    %120 = arith.maximumf %118, %119 : vector<64x8xf32>
    %121 = arith.addf %116, %120 : vector<64x8xf32>
    %122 = tpu.transpose %121, [1, 0] : vector<64x8xf32> -> vector<8x64xf32>
    %c1_143 = arith.constant 1 : index
    %c0_144 = arith.constant 0 : index
    %c0_145 = arith.constant 0 : index
    %123 = vector.load %arg10[%c1_143, %c0_144, %c0_145] : memref<2x8x64xf32, #tpu.memory_space<vmem>>, vector<1x8x64xf32>
    %124 = vector.shape_cast %123 : vector<1x8x64xf32> to vector<8x64xf32>
    %125 = vector.shape_cast %122 : vector<8x64xf32> to vector<1x8x64xf32>
    tpu.vector_store %arg10[%c1_143, %c0_144, %c0_145], %125 {strides = array<i32>} : memref<2x8x64xf32, #tpu.memory_space<vmem>>, vector<1x8x64xf32>,
    return
  }
  func.func @transform_0(%arg0: i32) -> (i32, i32, i32) {
    %c0_i32 = arith.constant 0 : i32
    %c0_i32_0 = arith.constant 0 : i32
    %c0_i32_1 = arith.constant 0 : i32
    return %arg0, %c0_i32, %c0_i32_0 : i32, i32, i32
  }
  func.func @transform_1(%arg0: i32) -> (i32, i32) {
    %c0_i32 = arith.constant 0 : i32
    %c0_i32_0 = arith.constant 0 : i32
    %c0_i32_1 = arith.constant 0 : i32
    return %c0_i32, %c0_i32_0 : i32, i32
  }
  func.func @transform_2(%arg0: i32) -> (i32, i32) {
    %c0_i32 = arith.constant 0 : i32
    %c0_i32_0 = arith.constant 0 : i32
    %c0_i32_1 = arith.constant 0 : i32
    return %c0_i32, %c0_i32_0 : i32, i32
  }
  func.func @transform_3(%arg0: i32) -> (i32, i32) {
    %c0_i32 = arith.constant 0 : i32
    %c0_i32_0 = arith.constant 0 : i32
    %c0_i32_1 = arith.constant 0 : i32
    return %c0_i32, %c0_i32_0 : i32, i32
  }
  func.func @transform_4(%arg0: i32) -> (i32, i32) {
    %c0_i32 = arith.constant 0 : i32
    %c0_i32_0 = arith.constant 0 : i32
    %c0_i32_1 = arith.constant 0 : i32
    return %c0_i32, %c0_i32_0 : i32, i32
  }
  func.func @transform_5(%arg0: i32) -> (i32, i32) {
    %c0_i32 = arith.constant 0 : i32
    %c0_i32_0 = arith.constant 0 : i32
    %c0_i32_1 = arith.constant 0 : i32
    return %c0_i32, %c0_i32_0 : i32, i32
  }
  func.func @transform_6(%arg0: i32) -> (i32, i32) {
    %c0_i32 = arith.constant 0 : i32
    %c0_i32_0 = arith.constant 0 : i32
    %c0_i32_1 = arith.constant 0 : i32
    return %c0_i32, %c0_i32_0 : i32, i32
  }
  func.func @transform_7(%arg0: i32) -> (i32, i32) {
    %c0_i32 = arith.constant 0 : i32
    %c0_i32_0 = arith.constant 0 : i32
    %c0_i32_1 = arith.constant 0 : i32
    return %c0_i32, %c0_i32_0 : i32, i32
  }
  func.func @transform_8(%arg0: i32) -> (i32, i32) {
    %c0_i32 = arith.constant 0 : i32
    %c0_i32_0 = arith.constant 0 : i32
    %c0_i32_1 = arith.constant 0 : i32
    return %c0_i32, %c0_i32_0 : i32, i32
  }
  func.func @transform_9(%arg0: i32) -> (i32, i32, i32) {
    %c0_i32 = arith.constant 0 : i32
    %c0_i32_0 = arith.constant 0 : i32
    %c0_i32_1 = arith.constant 0 : i32
    return %arg0, %c0_i32, %c0_i32_0 : i32, i32, i32
  }
}

</mosaic_0001>

<llo_original>
// kernel: tpu_custom_call.1
$region0: #{tpu_custom_call.1}
  #allocation0 [shape = 'u32[]', space=smem, size = 0x4, offset = 0x4, fixed_abs, tag = 'smem constant byte address 0x4 - core index']
  #allocation1 [shape = 'u32[144,128]{1,0:T(1,128)}', space=vmem, size = 0x12000, scoped, tag = 'internal scratch']
  #allocation2 [shape = 'f32[131,8]{1,0:T(8,128)}', space=vmem, size = 0x11000, scoped, tag = 'scratch operand']
  #allocation3 [shape = 'f32[64,40]{1,0:T(8,128)}', space=vmem, size = 0x8000, scoped, tag = 'scratch operand']
  #allocation4 [shape = 'f32[68,8]{1,0:T(8,128)}', space=vmem, size = 0x9000, scoped, tag = 'scratch operand']
  #allocation5 [shape = 'f32[64,40]{1,0:T(8,128)}', space=vmem, size = 0x8000, scoped, tag = 'scratch operand']
  #allocation6 [shape = 'f32[129,8]{1,0:T(8,128)}', space=vmem, size = 0x11000, scoped, tag = 'scratch operand']
  %s0 = inlined_call_operand.vmem [shape: f32[2,8,128], index: 0, kind: input, shape index: {}]
  %s1 = inlined_call_operand.vmem [shape: f32[1,8], index: 1, kind: input, shape index: {}]
  %s2 = inlined_call_operand.vmem [shape: f32[1,8], index: 2, kind: input, shape index: {}]
  %s3 = inlined_call_operand.vmem [shape: f32[40,8], index: 3, kind: input, shape index: {}]
  %s4 = inlined_call_operand.vmem [shape: f32[1,8], index: 4, kind: input, shape index: {}]
  %s5 = inlined_call_operand.vmem [shape: f32[1,8], index: 5, kind: input, shape index: {}]
  %s6 = inlined_call_operand.vmem [shape: f32[1,8], index: 6, kind: input, shape index: {}]
  %s7 = inlined_call_operand.vmem [shape: f32[40,8], index: 7, kind: input, shape index: {}]
  %s8 = inlined_call_operand.vmem [shape: f32[1,8], index: 8, kind: input, shape index: {}]
  %s9 = inlined_call_operand.hbm [shape: f32[2,8,64], index: 9, kind: output, shape index: {}]
  %s10 = sld [smem:[#allocation0]]
  $region46: #{tpu_custom_call.1} parent=0
    _
  %s12 = ssub.s32 1, %s10
  %s13 = scalar_select 0, %s12, %s10
  $region1: #{tpu_custom_call.1} parent=0
    #allocation7 [shape = 'u8[8192]{0}', space=vmem, size = 0x2000, scoped, tag = 'output window, operand 0, single buffered']
    #allocation8 [shape = 's32[1]{0}', space=sflag, size = 0x4, scoped, tag = 'scoped memory for tpu_custom_call.1']
    %14 = vsyncpa [#allocation8], 0
    // Predicated region
    $region2: #{tpu_custom_call.1} parent=1 // pred_check
      _
    $region3: #{tpu_custom_call.1} parent=1 // pred_check_branch
      %16 = sbr.rel (0) target = $region5
    $region4: #{tpu_custom_call.1} parent=1 // pred_region
      _
    $region5: #{tpu_custom_call.1} parent=1 // pred_fallthru
      _
    // Predicated region
    $region6: #{tpu_custom_call.1} parent=1 // pred_check
      _
    $region7: #{tpu_custom_call.1} parent=1 // pred_check_branch
      %18 = sbr.rel (0) target = $region9
    $region8: #{tpu_custom_call.1} parent=1 // pred_region
      _
    $region9: #{tpu_custom_call.1} parent=1 // pred_fallthru
      _
    // Predicated region
    $region10: #{tpu_custom_call.1} parent=1 // pred_check
      _
    $region11: #{tpu_custom_call.1} parent=1 // pred_check_branch
      %20 = sbr.rel (0) target = $region13
    $region12: #{tpu_custom_call.1} parent=1 // pred_region
      _
    $region13: #{tpu_custom_call.1} parent=1 // pred_fallthru
      _
    // Predicated region
    $region14: #{tpu_custom_call.1} parent=1 // pred_check
      _
    $region15: #{tpu_custom_call.1} parent=1 // pred_check_branch
      %22 = sbr.rel (0) target = $region17
    $region16: #{tpu_custom_call.1} parent=1 // pred_region
      _
    $region17: #{tpu_custom_call.1} parent=1 // pred_fallthru
      _
    // Predicated region
    $region18: #{tpu_custom_call.1} parent=1 // pred_check
      _
    $region19: #{tpu_custom_call.1} parent=1 // pred_check_branch
      %24 = sbr.rel (0) target = $region21
    $region20: #{tpu_custom_call.1} parent=1 // pred_region
      _
    $region21: #{tpu_custom_call.1} parent=1 // pred_fallthru
      _
    // Predicated region
    $region22: #{tpu_custom_call.1} parent=1 // pred_check
      _
    $region23: #{tpu_custom_call.1} parent=1 // pred_check_branch
      %26 = sbr.rel (0) target = $region25
    $region24: #{tpu_custom_call.1} parent=1 // pred_region
      _
    $region25: #{tpu_custom_call.1} parent=1 // pred_fallthru
      _
    // Predicated region
    $region26: #{tpu_custom_call.1} parent=1 // pred_check
      _
    $region27: #{tpu_custom_call.1} parent=1 // pred_check_branch
      %28 = sbr.rel (0) target = $region29
    $region28: #{tpu_custom_call.1} parent=1 // pred_region
      _
    $region29: #{tpu_custom_call.1} parent=1 // pred_fallthru
      _
    // Predicated region
    $region30: #{tpu_custom_call.1} parent=1 // pred_check
      _
    $region31: #{tpu_custom_call.1} parent=1 // pred_check_branch
      %30 = sbr.rel (0) target = $region33
    $region32: #{tpu_custom_call.1} parent=1 // pred_region
      _
    $region33: #{tpu_custom_call.1} parent=1 // pred_fallthru
      _
    // Predicated region
    $region34: #{tpu_custom_call.1} parent=1 // pred_check
      _
    $region35: #{tpu_custom_call.1} parent=1 // pred_check_branch
      %32 = sbr.rel (0) target = $region37
    $region36: #{tpu_custom_call.1} parent=1 // pred_region
      _
    $region37: #{tpu_custom_call.1} parent=1 // pred_fallthru
      _
    %vm33 = vcmask 57344
    %34 = vst.msk [vmem:[#allocation2] sm:$0x1] %vm33, 0.0
    %vm35 = vcmask 58368
    %36 = vst.msk [vmem:[#allocation2 + $0x81] sm:$0x3] %vm35, 0.0
    %37 = vst.msk [vmem:[#allocation4] sm:$0x3] %vm35, 0.0
    %38 = vst.msk [vmem:[#allocation4 + $0x42] sm:$0x3] %vm35, 0.0
    %39 = vst.msk [vmem:[#allocation6 + $0x80] sm:$0x1] %vm33, 0.0
    %v40 = vld [vmem:[%s1] sm:$0x1]
    %v41 = vld [vmem:[%s2] sm:$0x1]
    %v42 = vld [vmem:[%s5] sm:$0x1]
    %v43 = vld [vmem:[%s6] sm:$0x1]
    %v44 = vld [vmem:[%s3] sm:$0xff]
    %v45 = vld [vmem:[%s3 + $0x8] sm:$0xff]
    %v46 = vld [vmem:[%s3 + $0x10] sm:$0xff]
    %v47 = vld [vmem:[%s3 + $0x18] sm:$0xff]
    %v48 = vld [vmem:[%s3 + $0x20] sm:$0xff]
    %v49 = vld [vmem:[%s4] sm:$0x1]
    %v50 = vld [vmem:[%s7] sm:$0xff]
    %v51 = vld [vmem:[%s7 + $0x8] sm:$0xff]
    %v52 = vld [vmem:[%s7 + $0x10] sm:$0xff]
    %v53 = vld [vmem:[%s7 + $0x18] sm:$0xff]
    %v54 = vld [vmem:[%s7 + $0x20] sm:$0xff]
    %v55 = vld [vmem:[%s8] sm:$0x1]
    %v56 = vld [vmem:[%s0] sm:$0xff]
    %57 = vxpose.xlu0.b32.start [1/16] %v56, 128
    %58 = vxpose.xlu0.b32.cont [2/16] 0.0, 128
    %59 = vxpose.xlu0.b32.cont [3/16] 0.0, 128
    %60 = vxpose.xlu0.b32.cont [4/16] 0.0, 128
    %61 = vxpose.xlu0.b32.cont [5/16] 0.0, 128
    %62 = vxpose.xlu0.b32.cont [6/16] 0.0, 128
    %63 = vxpose.xlu0.b32.cont [7/16] 0.0, 128
    %64 = vxpose.xlu0.b32.cont [8/16] 0.0, 128
    %65 = vxpose.xlu0.b32.cont [9/16] 0.0, 128
    %66 = vxpose.xlu0.b32.cont [10/16] 0.0, 128
    %67 = vxpose.xlu0.b32.cont [11/16] 0.0, 128
    %68 = vxpose.xlu0.b32.cont [12/16] 0.0, 128
    %69 = vxpose.xlu0.b32.cont [13/16] 0.0, 128
    %70 = vxpose.xlu0.b32.cont [14/16] 0.0, 128
    %71 = vxpose.xlu0.b32.cont [15/16] 0.0, 128
    %72 = vxpose.xlu0.b32.end [16/16] 0.0, 128
    %v73 = vpop.trf.xlu0
    %v74 = vpop.trf.xlu0
    %v75 = vpop.trf.xlu0
    %v76 = vpop.trf.xlu0
    %v77 = vpop.trf.xlu0
    %v78 = vpop.trf.xlu0
    %v79 = vpop.trf.xlu0
    %v80 = vpop.trf.xlu0
    %v81 = vpop.trf.xlu0
    %v82 = vpop.trf.xlu0
    %v83 = vpop.trf.xlu0
    %v84 = vpop.trf.xlu0
    %v85 = vpop.trf.xlu0
    %v86 = vpop.trf.xlu0
    %v87 = vpop.trf.xlu0
    %v88 = vpop.trf.xlu0
    %v90 = vlaneseq
    %v91 = vshrl.u32 %v90, 7
    %v92 = vsub.s32 0, %v91
    %v93 = vrot.slane %v40, %v92
    %v95 = vmul.f32 %v73, %v93
    %v96 = vmul.f32 %v74, %v93
    %v97 = vmul.f32 %v75, %v93
    %v98 = vmul.f32 %v76, %v93
    %v99 = vmul.f32 %v77, %v93
    %v100 = vmul.f32 %v78, %v93
    %v101 = vmul.f32 %v79, %v93
    %v102 = vmul.f32 %v80, %v93
    %v103 = vmul.f32 %v81, %v93
    %v104 = vmul.f32 %v82, %v93
    %v105 = vmul.f32 %v83, %v93
    %v106 = vmul.f32 %v84, %v93
    %v107 = vmul.f32 %v85, %v93
    %v108 = vmul.f32 %v86, %v93
    %v109 = vmul.f32 %v87, %v93
    %v110 = vmul.f32 %v88, %v93
    %v112 = vlaneseq
    %v113 = vshrl.u32 %v112, 7
    %v114 = vsub.s32 0, %v113
    %v115 = vrot.slane %v41, %v114
    %v117 = vadd.f32 %v95, %v115
    %v118 = vadd.f32 %v96, %v115
    %v119 = vadd.f32 %v97, %v115
    %v120 = vadd.f32 %v98, %v115
    %v121 = vadd.f32 %v99, %v115
    %v122 = vadd.f32 %v100, %v115
    %v123 = vadd.f32 %v101, %v115
    %v124 = vadd.f32 %v102, %v115
    %v125 = vadd.f32 %v103, %v115
    %v126 = vadd.f32 %v104, %v115
    %v127 = vadd.f32 %v105, %v115
    %v128 = vadd.f32 %v106, %v115
    %v129 = vadd.f32 %v107, %v115
    %v130 = vadd.f32 %v108, %v115
    %v131 = vadd.f32 %v109, %v115
    %v132 = vadd.f32 %v110, %v115
    %v133 = vmax.f32 %v117, 0.0
    %v134 = vmax.f32 %v118, 0.0
    %v135 = vmax.f32 %v119, 0.0
    %v136 = vmax.f32 %v120, 0.0
    %v137 = vmax.f32 %v121, 0.0
    %v138 = vmax.f32 %v122, 0.0
    %v139 = vmax.f32 %v123, 0.0
    %v140 = vmax.f32 %v124, 0.0
    %v141 = vmax.f32 %v125, 0.0
    %v142 = vmax.f32 %v126, 0.0
    %v143 = vmax.f32 %v127, 0.0
    %v144 = vmax.f32 %v128, 0.0
    %v145 = vmax.f32 %v129, 0.0
    %v146 = vmax.f32 %v130, 0.0
    %v147 = vmax.f32 %v131, 0.0
    %v148 = vmax.f32 %v132, 0.0
    %vm149 = vcmask 64512
    %150 = vst.msk [vmem:[#allocation2 + $0x1] sm:$0xff] %vm149, %v133
    %151 = vst.msk [vmem:[#allocation2 + $0x9] sm:$0xff] %vm149, %v134
    %152 = vst.msk [vmem:[#allocation2 + $0x11] sm:$0xff] %vm149, %v135
    %153 = vst.msk [vmem:[#allocation2 + $0x19] sm:$0xff] %vm149, %v136
    %154 = vst.msk [vmem:[#allocation2 + $0x21] sm:$0xff] %vm149, %v137
    %155 = vst.msk [vmem:[#allocation2 + $0x29] sm:$0xff] %vm149, %v138
    %156 = vst.msk [vmem:[#allocation2 + $0x31] sm:$0xff] %vm149, %v139
    %157 = vst.msk [vmem:[#allocation2 + $0x39] sm:$0xff] %vm149, %v140
    %158 = vst.msk [vmem:[#allocation2 + $0x41] sm:$0xff] %vm149, %v141
    %159 = vst.msk [vmem:[#allocation2 + $0x49] sm:$0xff] %vm149, %v142
    %160 = vst.msk [vmem:[#allocation2 + $0x51] sm:$0xff] %vm149, %v143
    %161 = vst.msk [vmem:[#allocation2 + $0x59] sm:$0xff] %vm149, %v144
    %162 = vst.msk [vmem:[#allocation2 + $0x61] sm:$0xff] %vm149, %v145
    %163 = vst.msk [vmem:[#allocation2 + $0x69] sm:$0xff] %vm149, %v146
    %164 = vst.msk [vmem:[#allocation2 + $0x71] sm:$0xff] %vm149, %v147
    %165 = vst.msk [vmem:[#allocation2 + $0x79] sm:$0xff] %vm149, %v148
    %v166 = vld [vmem:[#allocation2] ss:$2 sm:$0xff]
    %s167 = scalar_lea.vmem [#allocation2], 16
    %v168 = vld [vmem:[%s167] ss:$2 sm:$0xff]
    %s169 = scalar_lea.vmem [#allocation2], 32
    %v170 = vld [vmem:[%s169] ss:$2 sm:$0xff]
    %s171 = scalar_lea.vmem [#allocation2], 48
    %v172 = vld [vmem:[%s171] ss:$2 sm:$0xff]
    %s173 = scalar_lea.vmem [#allocation2], 64
    %v174 = vld [vmem:[%s173] ss:$2 sm:$0xff]
    %s175 = scalar_lea.vmem [#allocation2], 80
    %v176 = vld [vmem:[%s175] ss:$2 sm:$0xff]
    %s177 = scalar_lea.vmem [#allocation2], 96
    %v178 = vld [vmem:[%s177] ss:$2 sm:$0xff]
    %s179 = scalar_lea.vmem [#allocation2], 112
    %v180 = vld [vmem:[%s179] ss:$2 sm:$0xff]
    %181 = vst.msk [vmem:[#allocation3] sm:$0xff] %vm149, %v166
    %182 = vst.msk [vmem:[#allocation3 + $0x8] sm:$0xff] %vm149, %v168
    %183 = vst.msk [vmem:[#allocation3 + $0x10] sm:$0xff] %vm149, %v170
    %184 = vst.msk [vmem:[#allocation3 + $0x18] sm:$0xff] %vm149, %v172
    %185 = vst.msk [vmem:[#allocation3 + $0x20] sm:$0xff] %vm149, %v174
    %186 = vst.msk [vmem:[#allocation3 + $0x28] sm:$0xff] %vm149, %v176
    %187 = vst.msk [vmem:[#allocation3 + $0x30] sm:$0xff] %vm149, %v178
    %188 = vst.msk [vmem:[#allocation3 + $0x38] sm:$0xff] %vm149, %v180
    %s189 = scalar_lea.vmem [#allocation2], 1
    %v190 = vld [vmem:[%s189] ss:$2 sm:$0xff]
    %s191 = scalar_lea.vmem [#allocation2], 17
    %v192 = vld [vmem:[%s191] ss:$2 sm:$0xff]
    %s193 = scalar_lea.vmem [#allocation2], 33
    %v194 = vld [vmem:[%s193] ss:$2 sm:$0xff]
    %s195 = scalar_lea.vmem [#allocation2], 49
    %v196 = vld [vmem:[%s195] ss:$2 sm:$0xff]
    %s197 = scalar_lea.vmem [#allocation2], 65
    %v198 = vld [vmem:[%s197] ss:$2 sm:$0xff]
    %s199 = scalar_lea.vmem [#allocation2], 81
    %v200 = vld [vmem:[%s199] ss:$2 sm:$0xff]
    %s201 = scalar_lea.vmem [#allocation2], 97
    %v202 = vld [vmem:[%s201] ss:$2 sm:$0xff]
    %s203 = scalar_lea.vmem [#allocation2], 113
    %v204 = vld [vmem:[%s203] ss:$2 sm:$0xff]
    %213 = vrot.lane.b32.xlu0 %v190, 8
    %v214 = vpop.permute.xlu0 %213
    %215 = vrot.lane.b32.xlu0 %v192, 8
    %v216 = vpop.permute.xlu0 %215
    %217 = vrot.lane.b32.xlu0 %v194, 8
    %v218 = vpop.permute.xlu0 %217
    %219 = vrot.lane.b32.xlu0 %v196, 8
    %v220 = vpop.permute.xlu0 %219
    %221 = vrot.lane.b32.xlu0 %v198, 8
    %v222 = vpop.permute.xlu0 %221
    %223 = vrot.lane.b32.xlu0 %v200, 8
    %v224 = vpop.permute.xlu0 %223
    %225 = vrot.lane.b32.xlu0 %v202, 8
    %v226 = vpop.permute.xlu0 %225
    %227 = vrot.lane.b32.xlu0 %v204, 8
    %v228 = vpop.permute.xlu0 %227
    %vm237 = vcmask 130112
    %238 = vst.msk [vmem:[#allocation3] sm:$0xff] %vm237, %v214
    %239 = vst.msk [vmem:[#allocation3 + $0x8] sm:$0xff] %vm237, %v216
    %240 = vst.msk [vmem:[#allocation3 + $0x10] sm:$0xff] %vm237, %v218
    %241 = vst.msk [vmem:[#allocation3 + $0x18] sm:$0xff] %vm237, %v220
    %242 = vst.msk [vmem:[#allocation3 + $0x20] sm:$0xff] %vm237, %v222
    %243 = vst.msk [vmem:[#allocation3 + $0x28] sm:$0xff] %vm237, %v224
    %244 = vst.msk [vmem:[#allocation3 + $0x30] sm:$0xff] %vm237, %v226
    %245 = vst.msk [vmem:[#allocation3 + $0x38] sm:$0xff] %vm237, %v228
    %s246 = scalar_lea.vmem [#allocation2], 2
    %v247 = vld [vmem:[%s246] ss:$2 sm:$0xff]
    %s248 = scalar_lea.vmem [#allocation2], 18
    %v249 = vld [vmem:[%s248] ss:$2 sm:$0xff]
    %s250 = scalar_lea.vmem [#allocation2], 34
    %v251 = vld [vmem:[%s250] ss:$2 sm:$0xff]
    %s252 = scalar_lea.vmem [#allocation2], 50
    %v253 = vld [vmem:[%s252] ss:$2 sm:$0xff]
    %s254 = scalar_lea.vmem [#allocation2], 66
    %v255 = vld [vmem:[%s254] ss:$2 sm:$0xff]
    %s256 = scalar_lea.vmem [#allocation2], 82
    %v257 = vld [vmem:[%s256] ss:$2 sm:$0xff]
    %s258 = scalar_lea.vmem [#allocation2], 98
    %v259 = vld [vmem:[%s258] ss:$2 sm:$0xff]
    %s260 = scalar_lea.vmem [#allocation2], 114
    %v261 = vld [vmem:[%s260] ss:$2 sm:$0xff]
    %270 = vrot.lane.b32.xlu0 %v247, 16
    %v271 = vpop.permute.xlu0 %270
    %272 = vrot.lane.b32.xlu0 %v249, 16
    %v273 = vpop.permute.xlu0 %272
    %274 = vrot.lane.b32.xlu0 %v251, 16
    %v275 = vpop.permute.xlu0 %274
    %276 = vrot.lane.b32.xlu0 %v253, 16
    %v277 = vpop.permute.xlu0 %276
    %278 = vrot.lane.b32.xlu0 %v255, 16
    %v279 = vpop.permute.xlu0 %278
    %280 = vrot.lane.b32.xlu0 %v257, 16
    %v281 = vpop.permute.xlu0 %280
    %282 = vrot.lane.b32.xlu0 %v259, 16
    %v283 = vpop.permute.xlu0 %282
    %284 = vrot.lane.b32.xlu0 %v261, 16
    %v285 = vpop.permute.xlu0 %284
    %vm294 = vcmask 195712
    %295 = vst.msk [vmem:[#allocation3] sm:$0xff] %vm294, %v271
    %296 = vst.msk [vmem:[#allocation3 + $0x8] sm:$0xff] %vm294, %v273
    %297 = vst.msk [vmem:[#allocation3 + $0x10] sm:$0xff] %vm294, %v275
    %298 = vst.msk [vmem:[#allocation3 + $0x18] sm:$0xff] %vm294, %v277
    %299 = vst.msk [vmem:[#allocation3 + $0x20] sm:$0xff] %vm294, %v279
    %300 = vst.msk [vmem:[#allocation3 + $0x28] sm:$0xff] %vm294, %v281
    %301 = vst.msk [vmem:[#allocation3 + $0x30] sm:$0xff] %vm294, %v283
    %302 = vst.msk [vmem:[#allocation3 + $0x38] sm:$0xff] %vm294, %v285
    %s303 = scalar_lea.vmem [#allocation2], 3
    %v304 = vld [vmem:[%s303] ss:$2 sm:$0xff]
    %s305 = scalar_lea.vmem [#allocation2], 19
    %v306 = vld [vmem:[%s305] ss:$2 sm:$0xff]
    %s307 = scalar_lea.vmem [#allocation2], 35
    %v308 = vld [vmem:[%s307] ss:$2 sm:$0xff]
    %s309 = scalar_lea.vmem [#allocation2], 51
    %v310 = vld [vmem:[%s309] ss:$2 sm:$0xff]
    %s311 = scalar_lea.vmem [#allocation2], 67
    %v312 = vld [vmem:[%s311] ss:$2 sm:$0xff]
    %s313 = scalar_lea.vmem [#allocation2], 83
    %v314 = vld [vmem:[%s313] ss:$2 sm:$0xff]
    %s315 = scalar_lea.vmem [#allocation2], 99
    %v316 = vld [vmem:[%s315] ss:$2 sm:$0xff]
    %s317 = scalar_lea.vmem [#allocation2], 115
    %v318 = vld [vmem:[%s317] ss:$2 sm:$0xff]
    %327 = vrot.lane.b32.xlu0 %v304, 24
    %v328 = vpop.permute.xlu0 %327
    %329 = vrot.lane.b32.xlu0 %v306, 24
    %v330 = vpop.permute.xlu0 %329
    %331 = vrot.lane.b32.xlu0 %v308, 24
    %v332 = vpop.permute.xlu0 %331
    %333 = vrot.lane.b32.xlu0 %v310, 24
    %v334 = vpop.permute.xlu0 %333
    %335 = vrot.lane.b32.xlu0 %v312, 24
    %v336 = vpop.permute.xlu0 %335
    %337 = vrot.lane.b32.xlu0 %v314, 24
    %v338 = vpop.permute.xlu0 %337
    %339 = vrot.lane.b32.xlu0 %v316, 24
    %v340 = vpop.permute.xlu0 %339
    %341 = vrot.lane.b32.xlu0 %v318, 24
    %v342 = vpop.permute.xlu0 %341
    %vm351 = vcmask 261312
    %352 = vst.msk [vmem:[#allocation3] sm:$0xff] %vm351, %v328
    %353 = vst.msk [vmem:[#allocation3 + $0x8] sm:$0xff] %vm351, %v330
    %354 = vst.msk [vmem:[#allocation3 + $0x10] sm:$0xff] %vm351, %v332
    %355 = vst.msk [vmem:[#allocation3 + $0x18] sm:$0xff] %vm351, %v334
    %356 = vst.msk [vmem:[#allocation3 + $0x20] sm:$0xff] %vm351, %v336
    %357 = vst.msk [vmem:[#allocation3 + $0x28] sm:$0xff] %vm351, %v338
    %358 = vst.msk [vmem:[#allocation3 + $0x30] sm:$0xff] %vm351, %v340
    %359 = vst.msk [vmem:[#allocation3 + $0x38] sm:$0xff] %vm351, %v342
    %s360 = scalar_lea.vmem [#allocation2], 4
    %v361 = vld [vmem:[%s360] ss:$2 sm:$0xff]
    %s362 = scalar_lea.vmem [#allocation2], 20
    %v363 = vld [vmem:[%s362] ss:$2 sm:$0xff]
    %s364 = scalar_lea.vmem [#allocation2], 36
    %v365 = vld [vmem:[%s364] ss:$2 sm:$0xff]
    %s366 = scalar_lea.vmem [#allocation2], 52
    %v367 = vld [vmem:[%s366] ss:$2 sm:$0xff]
    %s368 = scalar_lea.vmem [#allocation2], 68
    %v369 = vld [vmem:[%s368] ss:$2 sm:$0xff]
    %s370 = scalar_lea.vmem [#allocation2], 84
    %v371 = vld [vmem:[%s370] ss:$2 sm:$0xff]
    %s372 = scalar_lea.vmem [#allocation2], 100
    %v373 = vld [vmem:[%s372] ss:$2 sm:$0xff]
    %s374 = scalar_lea.vmem [#allocation2], 116
    %v375 = vld [vmem:[%s374] ss:$2 sm:$0xff]
    %384 = vrot.lane.b32.xlu0 %v361, 32
    %v385 = vpop.permute.xlu0 %384
    %386 = vrot.lane.b32.xlu0 %v363, 32
    %v387 = vpop.permute.xlu0 %386
    %388 = vrot.lane.b32.xlu0 %v365, 32
    %v389 = vpop.permute.xlu0 %388
    %390 = vrot.lane.b32.xlu0 %v367, 32
    %v391 = vpop.permute.xlu0 %390
    %392 = vrot.lane.b32.xlu0 %v369, 32
    %v393 = vpop.permute.xlu0 %392
    %394 = vrot.lane.b32.xlu0 %v371, 32
    %v395 = vpop.permute.xlu0 %394
    %396 = vrot.lane.b32.xlu0 %v373, 32
    %v397 = vpop.permute.xlu0 %396
    %398 = vrot.lane.b32.xlu0 %v375, 32
    %v399 = vpop.permute.xlu0 %398
    %vm408 = vcmask 326912
    %409 = vst.msk [vmem:[#allocation3] sm:$0xff] %vm408, %v385
    %410 = vst.msk [vmem:[#allocation3 + $0x8] sm:$0xff] %vm408, %v387
    %411 = vst.msk [vmem:[#allocation3 + $0x10] sm:$0xff] %vm408, %v389
    %412 = vst.msk [vmem:[#allocation3 + $0x18] sm:$0xff] %vm408, %v391
    %413 = vst.msk [vmem:[#allocation3 + $0x20] sm:$0xff] %vm408, %v393
    %414 = vst.msk [vmem:[#allocation3 + $0x28] sm:$0xff] %vm408, %v395
    %415 = vst.msk [vmem:[#allocation3 + $0x30] sm:$0xff] %vm408, %v397
    %416 = vst.msk [vmem:[#allocation3 + $0x38] sm:$0xff] %vm408, %v399
    %v417 = vld [vmem:[#allocation3] sm:$0xff]
    %v418 = vld [vmem:[#allocation3 + $0x8] sm:$0xff]
    %v419 = vld [vmem:[#allocation3 + $0x10] sm:$0xff]
    %v420 = vld [vmem:[#allocation3 + $0x18] sm:$0xff]
    %v421 = vld [vmem:[#allocation3 + $0x20] sm:$0xff]
    %v422 = vld [vmem:[#allocation3 + $0x28] sm:$0xff]
    %v423 = vld [vmem:[#allocation3 + $0x30] sm:$0xff]
    %v424 = vld [vmem:[#allocation3 + $0x38] sm:$0xff]
    %v426 = vlaneseq
    %v427 = vshrl.u32 %v426, 7
    %v428 = vsub.s32 0, %v427
    %v429 = vrot.slane %v49, %v428
    %vm431 = vcmask 326656
    %v433 = vsel %vm431, %v417, 0
    %v436 = vsel %vm431, %v418, 0
    %v439 = vsel %vm431, %v419, 0
    %v442 = vsel %vm431, %v420, 0
    %v445 = vsel %vm431, %v421, 0
    %v448 = vsel %vm431, %v422, 0
    %v451 = vsel %vm431, %v423, 0
    %v454 = vsel %vm431, %v424, 0
    %456 = vmatprep.subr.mxu0 0.0
    %457 = vmatpush1.msra.mxu0 %v44
    %458 = vmatprep.subr.mxu0 0.0
    %459 = vmatpush1.msra.mxu0 %v45
    %460 = vmatprep.subr.mxu0 0.0
    %461 = vmatpush1.msra.mxu0 %v46
    %462 = vmatprep.subr.mxu0 0.0
    %463 = vmatpush1.msra.mxu0 %v47
    %464 = vmatprep.subr.mxu0 0.0
    %465 = vmatpush1.msra.mxu0 %v48
    %466 = vmatprep.subr.mxu0 0.0
    %467 = vmatpush1.msra.mxu0 0.0
    %468 = vmatprep.subr.mxu0 0.0
    %469 = vmatpush1.msra.mxu0 0.0
    %470 = vmatprep.subr.mxu0 0.0
    %471 = vmatpush1.msra.mxu0 0.0
    %472 = vmatprep.subr.mxu0 0.0
    %473 = vmatpush1.msra.mxu0 0.0
    %474 = vmatprep.subr.mxu0 0.0
    %475 = vmatpush1.msra.mxu0 0.0
    %476 = vmatprep.subr.mxu0 0.0
    %477 = vmatpush1.msra.mxu0 0.0
    %478 = vmatprep.subr.mxu0 0.0
    %479 = vmatpush1.msra.mxu0 0.0
    %480 = vmatprep.subr.mxu0 0.0
    %481 = vmatpush1.msra.mxu0 0.0
    %482 = vmatprep.subr.mxu0 0.0
    %483 = vmatpush1.msra.mxu0 0.0
    %484 = vmatprep.subr.mxu0 0.0
    %485 = vmatpush1.msra.mxu0 0.0
    %486 = vmatprep.subr.mxu0 0.0
    %487 = vmatpush1.msra.mxu0 0.0
    %488 = vmatprep.subr.mxu0 0.0
    %489 = vmatpush1.msra.mxu0 0.0
    %490 = vmatprep.subr.mxu0 0.0
    %491 = vmatpush1.msra.mxu0 0.0
    %492 = vmatprep.subr.mxu0 0.0
    %493 = vmatpush1.msra.mxu0 0.0
    %494 = vmatprep.subr.mxu0 0.0
    %495 = vmatpush1.msra.mxu0 0.0
    %496 = vmatprep.subr.mxu0 0.0
    %497 = vmatpush1.msra.mxu0 0.0
    %498 = vmatprep.subr.mxu0 0.0
    %499 = vmatpush1.msra.mxu0 0.0
    %500 = vmatprep.subr.mxu0 0.0
    %501 = vmatpush1.msra.mxu0 0.0
    %502 = vmatprep.subr.mxu0 0.0
    %503 = vmatpush1.msra.mxu0 0.0
    %504 = vmatprep.subr.mxu0 0.0
    %505 = vmatpush1.msra.mxu0 0.0
    %506 = vmatprep.subr.mxu0 0.0
    %507 = vmatpush1.msra.mxu0 0.0
    %508 = vmatprep.subr.mxu0 0.0
    %509 = vmatpush1.msra.mxu0 0.0
    %510 = vmatprep.subr.mxu0 0.0
    %511 = vmatpush1.msra.mxu0 0.0
    %512 = vmatprep.subr.mxu0 0.0
    %513 = vmatpush1.msra.mxu0 0.0
    %514 = vmatprep.subr.mxu0 0.0
    %515 = vmatpush1.msra.mxu0 0.0
    %516 = vmatprep.subr.mxu0 0.0
    %517 = vmatpush1.msra.mxu0 0.0
    %518 = vmatprep.subr.mxu0 0.0
    %519 = vmatpush1.msra.mxu0 0.0
    %520 = vmatprep.mubr.f32.mxu0 0.0
    %521 = vmatmul.mubr.f32.gmra.mrb[0].mxu0 %v433
    %v522 = vpop.f32.mrb[0].mxu0
    %v523 = vadd.f32 %v429, %v522
    %v524 = vpop.f32.mrb[0].mxu0
    %525 = vmatprep.mubr.f32.mxu0 0.0
    %526 = vmatmul.mubr.f32.gmra.mrb[0].mxu0 %v436
    %v527 = vpop.f32.mrb[0].mxu0
    %v528 = vadd.f32 %v429, %v527
    %v529 = vpop.f32.mrb[0].mxu0
    %530 = vmatprep.mubr.f32.mxu0 0.0
    %531 = vmatmul.mubr.f32.gmra.mrb[0].mxu0 %v439
    %v532 = vpop.f32.mrb[0].mxu0
    %v533 = vadd.f32 %v429, %v532
    %v534 = vpop.f32.mrb[0].mxu0
    %535 = vmatprep.mubr.f32.mxu0 0.0
    %536 = vmatmul.mubr.f32.gmra.mrb[0].mxu0 %v442
    %v537 = vpop.f32.mrb[0].mxu0
    %v538 = vadd.f32 %v429, %v537
    %v539 = vpop.f32.mrb[0].mxu0
    %540 = vmatprep.mubr.f32.mxu0 0.0
    %541 = vmatmul.mubr.f32.gmra.mrb[0].mxu0 %v445
    %v542 = vpop.f32.mrb[0].mxu0
    %v543 = vadd.f32 %v429, %v542
    %v544 = vpop.f32.mrb[0].mxu0
    %545 = vmatprep.mubr.f32.mxu0 0.0
    %546 = vmatmul.mubr.f32.gmra.mrb[0].mxu0 %v448
    %v547 = vpop.f32.mrb[0].mxu0
    %v548 = vadd.f32 %v429, %v547
    %v549 = vpop.f32.mrb[0].mxu0
    %550 = vmatprep.mubr.f32.mxu0 0.0
    %551 = vmatmul.mubr.f32.gmra.mrb[0].mxu0 %v451
    %v552 = vpop.f32.mrb[0].mxu0
    %v553 = vadd.f32 %v429, %v552
    %v554 = vpop.f32.mrb[0].mxu0
    %555 = vmatprep.mubr.f32.mxu0 0.0
    %556 = vmatmul.mubr.f32.gmra.mrb[0].mxu0 %v454
    %v557 = vpop.f32.mrb[0].mxu0
    %v558 = vadd.f32 %v429, %v557
    %v559 = vpop.f32.mrb[0].mxu0
    %560 = vdwg.mxu0
    %v562 = vlaneseq
    %v563 = vshrl.u32 %v562, 7
    %v564 = vsub.s32 0, %v563
    %v565 = vrot.slane %v42, %v564
    %v567 = vmul.f32 %v523, %v565
    %v568 = vmul.f32 %v528, %v565
    %v569 = vmul.f32 %v533, %v565
    %v570 = vmul.f32 %v538, %v565
    %v571 = vmul.f32 %v543, %v565
    %v572 = vmul.f32 %v548, %v565
    %v573 = vmul.f32 %v553, %v565
    %v574 = vmul.f32 %v558, %v565
    %v576 = vlaneseq
    %v577 = vshrl.u32 %v576, 7
    %v578 = vsub.s32 0, %v577
    %v579 = vrot.slane %v43, %v578
    %v581 = vadd.f32 %v567, %v579
    %v582 = vadd.f32 %v568, %v579
    %v583 = vadd.f32 %v569, %v579
    %v584 = vadd.f32 %v570, %v579
    %v585 = vadd.f32 %v571, %v579
    %v586 = vadd.f32 %v572, %v579
    %v587 = vadd.f32 %v573, %v579
    %v588 = vadd.f32 %v574, %v579
    %v589 = vmax.f32 %v581, 0.0
    %v590 = vmax.f32 %v582, 0.0
    %v591 = vmax.f32 %v583, 0.0
    %v592 = vmax.f32 %v584, 0.0
    %v593 = vmax.f32 %v585, 0.0
    %v594 = vmax.f32 %v586, 0.0
    %v595 = vmax.f32 %v587, 0.0
    %v596 = vmax.f32 %v588, 0.0
    %597 = vst.msk [vmem:[#allocation4 + $0x2] sm:$0xff] %vm149, %v589
    %598 = vst.msk [vmem:[#allocation4 + $0xa] sm:$0xff] %vm149, %v590
    %599 = vst.msk [vmem:[#allocation4 + $0x12] sm:$0xff] %vm149, %v591
    %600 = vst.msk [vmem:[#allocation4 + $0x1a] sm:$0xff] %vm149, %v592
    %601 = vst.msk [vmem:[#allocation4 + $0x22] sm:$0xff] %vm149, %v593
    %602 = vst.msk [vmem:[#allocation4 + $0x2a] sm:$0xff] %vm149, %v594
    %603 = vst.msk [vmem:[#allocation4 + $0x32] sm:$0xff] %vm149, %v595
    %604 = vst.msk [vmem:[#allocation4 + $0x3a] sm:$0xff] %vm149, %v596
    %v605 = vld [vmem:[#allocation4] sm:$0xff]
    %v606 = vld [vmem:[#allocation4 + $0x8] sm:$0xff]
    %v607 = vld [vmem:[#allocation4 + $0x10] sm:$0xff]
    %v608 = vld [vmem:[#allocation4 + $0x18] sm:$0xff]
    %v609 = vld [vmem:[#allocation4 + $0x20] sm:$0xff]
    %v610 = vld [vmem:[#allocation4 + $0x28] sm:$0xff]
    %v611 = vld [vmem:[#allocation4 + $0x30] sm:$0xff]
    %v612 = vld [vmem:[#allocation4 + $0x38] sm:$0xff]
    %613 = vst.msk [vmem:[#allocation5] sm:$0xff] %vm149, %v605
    %614 = vst.msk [vmem:[#allocation5 + $0x8] sm:$0xff] %vm149, %v606
    %615 = vst.msk [vmem:[#allocation5 + $0x10] sm:$0xff] %vm149, %v607
    %616 = vst.msk [vmem:[#allocation5 + $0x18] sm:$0xff] %vm149, %v608
    %617 = vst.msk [vmem:[#allocation5 + $0x20] sm:$0xff] %vm149, %v609
    %618 = vst.msk [vmem:[#allocation5 + $0x28] sm:$0xff] %vm149, %v610
    %619 = vst.msk [vmem:[#allocation5 + $0x30] sm:$0xff] %vm149, %v611
    %620 = vst.msk [vmem:[#allocation5 + $0x38] sm:$0xff] %vm149, %v612
    %v621 = vld [vmem:[#allocation4 + $0x1] sm:$0xff]
    %v622 = vld [vmem:[#allocation4 + $0x9] sm:$0xff]
    %v623 = vld [vmem:[#allocation4 + $0x11] sm:$0xff]
    %v624 = vld [vmem:[#allocation4 + $0x19] sm:$0xff]
    %v625 = vld [vmem:[#allocation4 + $0x21] sm:$0xff]
    %v626 = vld [vmem:[#allocation4 + $0x29] sm:$0xff]
    %v627 = vld [vmem:[#allocation4 + $0x31] sm:$0xff]
    %v628 = vld [vmem:[#allocation4 + $0x39] sm:$0xff]
    %637 = vrot.lane.b32.xlu0 %v621, 8
    %v638 = vpop.permute.xlu0 %637
    %639 = vrot.lane.b32.xlu0 %v622, 8
    %v640 = vpop.permute.xlu0 %639
    %641 = vrot.lane.b32.xlu0 %v623, 8
    %v642 = vpop.permute.xlu0 %641
    %643 = vrot.lane.b32.xlu0 %v624, 8
    %v644 = vpop.permute.xlu0 %643
    %645 = vrot.lane.b32.xlu0 %v625, 8
    %v646 = vpop.permute.xlu0 %645
    %647 = vrot.lane.b32.xlu0 %v626, 8
    %v648 = vpop.permute.xlu0 %647
    %649 = vrot.lane.b32.xlu0 %v627, 8
    %v650 = vpop.permute.xlu0 %649
    %651 = vrot.lane.b32.xlu0 %v628, 8
    %v652 = vpop.permute.xlu0 %651
    %661 = vst.msk [vmem:[#allocation5] sm:$0xff] %vm237, %v638
    %662 = vst.msk [vmem:[#allocation5 + $0x8] sm:$0xff] %vm237, %v640
    %663 = vst.msk [vmem:[#allocation5 + $0x10] sm:$0xff] %vm237, %v642
    %664 = vst.msk [vmem:[#allocation5 + $0x18] sm:$0xff] %vm237, %v644
    %665 = vst.msk [vmem:[#allocation5 + $0x20] sm:$0xff] %vm237, %v646
    %666 = vst.msk [vmem:[#allocation5 + $0x28] sm:$0xff] %vm237, %v648
    %667 = vst.msk [vmem:[#allocation5 + $0x30] sm:$0xff] %vm237, %v650
    %668 = vst.msk [vmem:[#allocation5 + $0x38] sm:$0xff] %vm237, %v652
    %v669 = vld [vmem:[#allocation4 + $0x2] sm:$0xff]
    %v670 = vld [vmem:[#allocation4 + $0xa] sm:$0xff]
    %v671 = vld [vmem:[#allocation4 + $0x12] sm:$0xff]
    %v672 = vld [vmem:[#allocation4 + $0x1a] sm:$0xff]
    %v673 = vld [vmem:[#allocation4 + $0x22] sm:$0xff]
    %v674 = vld [vmem:[#allocation4 + $0x2a] sm:$0xff]
    %v675 = vld [vmem:[#allocation4 + $0x32] sm:$0xff]
    %v676 = vld [vmem:[#allocation4 + $0x3a] sm:$0xff]
    %685 = vrot.lane.b32.xlu0 %v669, 16
    %v686 = vpop.permute.xlu0 %685
    %687 = vrot.lane.b32.xlu0 %v670, 16
    %v688 = vpop.permute.xlu0 %687
    %689 = vrot.lane.b32.xlu0 %v671, 16
    %v690 = vpop.permute.xlu0 %689
    %691 = vrot.lane.b32.xlu0 %v672, 16
    %v692 = vpop.permute.xlu0 %691
    %693 = vrot.lane.b32.xlu0 %v673, 16
    %v694 = vpop.permute.xlu0 %693
    %695 = vrot.lane.b32.xlu0 %v674, 16
    %v696 = vpop.permute.xlu0 %695
    %697 = vrot.lane.b32.xlu0 %v675, 16
    %v698 = vpop.permute.xlu0 %697
    %699 = vrot.lane.b32.xlu0 %v676, 16
    %v700 = vpop.permute.xlu0 %699
    %709 = vst.msk [vmem:[#allocation5] sm:$0xff] %vm294, %v686
    %710 = vst.msk [vmem:[#allocation5 + $0x8] sm:$0xff] %vm294, %v688
    %711 = vst.msk [vmem:[#allocation5 + $0x10] sm:$0xff] %vm294, %v690
    %712 = vst.msk [vmem:[#allocation5 + $0x18] sm:$0xff] %vm294, %v692
    %713 = vst.msk [vmem:[#allocation5 + $0x20] sm:$0xff] %vm294, %v694
    %714 = vst.msk [vmem:[#allocation5 + $0x28] sm:$0xff] %vm294, %v696
    %715 = vst.msk [vmem:[#allocation5 + $0x30] sm:$0xff] %vm294, %v698
    %716 = vst.msk [vmem:[#allocation5 + $0x38] sm:$0xff] %vm294, %v700
    %v717 = vld [vmem:[#allocation4 + $0x3] sm:$0xff]
    %v718 = vld [vmem:[#allocation4 + $0xb] sm:$0xff]
    %v719 = vld [vmem:[#allocation4 + $0x13] sm:$0xff]
    %v720 = vld [vmem:[#allocation4 + $0x1b] sm:$0xff]
    %v721 = vld [vmem:[#allocation4 + $0x23] sm:$0xff]
    %v722 = vld [vmem:[#allocation4 + $0x2b] sm:$0xff]
    %v723 = vld [vmem:[#allocation4 + $0x33] sm:$0xff]
    %v724 = vld [vmem:[#allocation4 + $0x3b] sm:$0xff]
    %733 = vrot.lane.b32.xlu0 %v717, 24
    %v734 = vpop.permute.xlu0 %733
    %735 = vrot.lane.b32.xlu0 %v718, 24
    %v736 = vpop.permute.xlu0 %735
    %737 = vrot.lane.b32.xlu0 %v719, 24
    %v738 = vpop.permute.xlu0 %737
    %739 = vrot.lane.b32.xlu0 %v720, 24
    %v740 = vpop.permute.xlu0 %739
    %741 = vrot.lane.b32.xlu0 %v721, 24
    %v742 = vpop.permute.xlu0 %741
    %743 = vrot.lane.b32.xlu0 %v722, 24
    %v744 = vpop.permute.xlu0 %743
    %745 = vrot.lane.b32.xlu0 %v723, 24
    %v746 = vpop.permute.xlu0 %745
    %747 = vrot.lane.b32.xlu0 %v724, 24
    %v748 = vpop.permute.xlu0 %747
    %757 = vst.msk [vmem:[#allocation5] sm:$0xff] %vm351, %v734
    %758 = vst.msk [vmem:[#allocation5 + $0x8] sm:$0xff] %vm351, %v736
    %759 = vst.msk [vmem:[#allocation5 + $0x10] sm:$0xff] %vm351, %v738
    %760 = vst.msk [vmem:[#allocation5 + $0x18] sm:$0xff] %vm351, %v740
    %761 = vst.msk [vmem:[#allocation5 + $0x20] sm:$0xff] %vm351, %v742
    %762 = vst.msk [vmem:[#allocation5 + $0x28] sm:$0xff] %vm351, %v744
    %763 = vst.msk [vmem:[#allocation5 + $0x30] sm:$0xff] %vm351, %v746
    %764 = vst.msk [vmem:[#allocation5 + $0x38] sm:$0xff] %vm351, %v748
    %v765 = vld [vmem:[#allocation4 + $0x4] sm:$0xff]
    %v766 = vld [vmem:[#allocation4 + $0xc] sm:$0xff]
    %v767 = vld [vmem:[#allocation4 + $0x14] sm:$0xff]
    %v768 = vld [vmem:[#allocation4 + $0x1c] sm:$0xff]
    %v769 = vld [vmem:[#allocation4 + $0x24] sm:$0xff]
    %v770 = vld [vmem:[#allocation4 + $0x2c] sm:$0xff]
    %v771 = vld [vmem:[#allocation4 + $0x34] sm:$0xff]
    %v772 = vld [vmem:[#allocation4 + $0x3c] sm:$0xff]
    %781 = vrot.lane.b32.xlu0 %v765, 32
    %v782 = vpop.permute.xlu0 %781
    %783 = vrot.lane.b32.xlu0 %v766, 32
    %v784 = vpop.permute.xlu0 %783
    %785 = vrot.lane.b32.xlu0 %v767, 32
    %v786 = vpop.permute.xlu0 %785
    %787 = vrot.lane.b32.xlu0 %v768, 32
    %v788 = vpop.permute.xlu0 %787
    %789 = vrot.lane.b32.xlu0 %v769, 32
    %v790 = vpop.permute.xlu0 %789
    %791 = vrot.lane.b32.xlu0 %v770, 32
    %v792 = vpop.permute.xlu0 %791
    %793 = vrot.lane.b32.xlu0 %v771, 32
    %v794 = vpop.permute.xlu0 %793
    %795 = vrot.lane.b32.xlu0 %v772, 32
    %v796 = vpop.permute.xlu0 %795
    %805 = vst.msk [vmem:[#allocation5] sm:$0xff] %vm408, %v782
    %806 = vst.msk [vmem:[#allocation5 + $0x8] sm:$0xff] %vm408, %v784
    %807 = vst.msk [vmem:[#allocation5 + $0x10] sm:$0xff] %vm408, %v786
    %808 = vst.msk [vmem:[#allocation5 + $0x18] sm:$0xff] %vm408, %v788
    %809 = vst.msk [vmem:[#allocation5 + $0x20] sm:$0xff] %vm408, %v790
    %810 = vst.msk [vmem:[#allocation5 + $0x28] sm:$0xff] %vm408, %v792
    %811 = vst.msk [vmem:[#allocation5 + $0x30] sm:$0xff] %vm408, %v794
    %812 = vst.msk [vmem:[#allocation5 + $0x38] sm:$0xff] %vm408, %v796
    %v813 = vld [vmem:[#allocation5] sm:$0xff]
    %v814 = vld [vmem:[#allocation5 + $0x8] sm:$0xff]
    %v815 = vld [vmem:[#allocation5 + $0x10] sm:$0xff]
    %v816 = vld [vmem:[#allocation5 + $0x18] sm:$0xff]
    %v817 = vld [vmem:[#allocation5 + $0x20] sm:$0xff]
    %v818 = vld [vmem:[#allocation5 + $0x28] sm:$0xff]
    %v819 = vld [vmem:[#allocation5 + $0x30] sm:$0xff]
    %v820 = vld [vmem:[#allocation5 + $0x38] sm:$0xff]
    %v822 = vlaneseq
    %v823 = vshrl.u32 %v822, 7
    %v824 = vsub.s32 0, %v823
    %v825 = vrot.slane %v55, %v824
    %v828 = vsel %vm431, %v813, 0
    %v831 = vsel %vm431, %v814, 0
    %v834 = vsel %vm431, %v815, 0
    %v837 = vsel %vm431, %v816, 0
    %v840 = vsel %vm431, %v817, 0
    %v843 = vsel %vm431, %v818, 0
    %v846 = vsel %vm431, %v819, 0
    %v849 = vsel %vm431, %v820, 0
    %851 = vmatprep.subr.mxu0 0.0
    %852 = vmatpush1.msra.mxu0 %v50
    %853 = vmatprep.subr.mxu0 0.0
    %854 = vmatpush1.msra.mxu0 %v51
    %855 = vmatprep.subr.mxu0 0.0
    %856 = vmatpush1.msra.mxu0 %v52
    %857 = vmatprep.subr.mxu0 0.0
    %858 = vmatpush1.msra.mxu0 %v53
    %859 = vmatprep.subr.mxu0 0.0
    %860 = vmatpush1.msra.mxu0 %v54
    %861 = vmatprep.subr.mxu0 0.0
    %862 = vmatpush1.msra.mxu0 0.0
    %863 = vmatprep.subr.mxu0 0.0
    %864 = vmatpush1.msra.mxu0 0.0
    %865 = vmatprep.subr.mxu0 0.0
    %866 = vmatpush1.msra.mxu0 0.0
    %867 = vmatprep.subr.mxu0 0.0
    %868 = vmatpush1.msra.mxu0 0.0
    %869 = vmatprep.subr.mxu0 0.0
    %870 = vmatpush1.msra.mxu0 0.0
    %871 = vmatprep.subr.mxu0 0.0
    %872 = vmatpush1.msra.mxu0 0.0
    %873 = vmatprep.subr.mxu0 0.0
    %874 = vmatpush1.msra.mxu0 0.0
    %875 = vmatprep.subr.mxu0 0.0
    %876 = vmatpush1.msra.mxu0 0.0
    %877 = vmatprep.subr.mxu0 0.0
    %878 = vmatpush1.msra.mxu0 0.0
    %879 = vmatprep.subr.mxu0 0.0
    %880 = vmatpush1.msra.mxu0 0.0
    %881 = vmatprep.subr.mxu0 0.0
    %882 = vmatpush1.msra.mxu0 0.0
    %883 = vmatprep.subr.mxu0 0.0
    %884 = vmatpush1.msra.mxu0 0.0
    %885 = vmatprep.subr.mxu0 0.0
    %886 = vmatpush1.msra.mxu0 0.0
    %887 = vmatprep.subr.mxu0 0.0
    %888 = vmatpush1.msra.mxu0 0.0
    %889 = vmatprep.subr.mxu0 0.0
    %890 = vmatpush1.msra.mxu0 0.0
    %891 = vmatprep.subr.mxu0 0.0
    %892 = vmatpush1.msra.mxu0 0.0
    %893 = vmatprep.subr.mxu0 0.0
    %894 = vmatpush1.msra.mxu0 0.0
    %895 = vmatprep.subr.mxu0 0.0
    %896 = vmatpush1.msra.mxu0 0.0
    %897 = vmatprep.subr.mxu0 0.0
    %898 = vmatpush1.msra.mxu0 0.0
    %899 = vmatprep.subr.mxu0 0.0
    %900 = vmatpush1.msra.mxu0 0.0
    %901 = vmatprep.subr.mxu0 0.0
    %902 = vmatpush1.msra.mxu0 0.0
    %903 = vmatprep.subr.mxu0 0.0
    %904 = vmatpush1.msra.mxu0 0.0
    %905 = vmatprep.subr.mxu0 0.0
    %906 = vmatpush1.msra.mxu0 0.0
    %907 = vmatprep.subr.mxu0 0.0
    %908 = vmatpush1.msra.mxu0 0.0
    %909 = vmatprep.subr.mxu0 0.0
    %910 = vmatpush1.msra.mxu0 0.0
    %911 = vmatprep.subr.mxu0 0.0
    %912 = vmatpush1.msra.mxu0 0.0
    %913 = vmatprep.subr.mxu0 0.0
    %914 = vmatpush1.msra.mxu0 0.0
    %915 = vmatprep.mubr.f32.mxu0 0.0
    %916 = vmatmul.mubr.f32.gmra.mrb[0].mxu0 %v828
    %v917 = vpop.f32.mrb[0].mxu0
    %v918 = vadd.f32 %v825, %v917
    %v919 = vpop.f32.mrb[0].mxu0
    %920 = vmatprep.mubr.f32.mxu0 0.0
    %921 = vmatmul.mubr.f32.gmra.mrb[0].mxu0 %v831
    %v922 = vpop.f32.mrb[0].mxu0
    %v923 = vadd.f32 %v825, %v922
    %v924 = vpop.f32.mrb[0].mxu0
    %925 = vmatprep.mubr.f32.mxu0 0.0
    %926 = vmatmul.mubr.f32.gmra.mrb[0].mxu0 %v834
    %v927 = vpop.f32.mrb[0].mxu0
    %v928 = vadd.f32 %v825, %v927
    %v929 = vpop.f32.mrb[0].mxu0
    %930 = vmatprep.mubr.f32.mxu0 0.0
    %931 = vmatmul.mubr.f32.gmra.mrb[0].mxu0 %v837
    %v932 = vpop.f32.mrb[0].mxu0
    %v933 = vadd.f32 %v825, %v932
    %v934 = vpop.f32.mrb[0].mxu0
    %935 = vmatprep.mubr.f32.mxu0 0.0
    %936 = vmatmul.mubr.f32.gmra.mrb[0].mxu0 %v840
    %v937 = vpop.f32.mrb[0].mxu0
    %v938 = vadd.f32 %v825, %v937
    %v939 = vpop.f32.mrb[0].mxu0
    %940 = vmatprep.mubr.f32.mxu0 0.0
    %941 = vmatmul.mubr.f32.gmra.mrb[0].mxu0 %v843
    %v942 = vpop.f32.mrb[0].mxu0
    %v943 = vadd.f32 %v825, %v942
    %v944 = vpop.f32.mrb[0].mxu0
    %945 = vmatprep.mubr.f32.mxu0 0.0
    %946 = vmatmul.mubr.f32.gmra.mrb[0].mxu0 %v846
    %v947 = vpop.f32.mrb[0].mxu0
    %v948 = vadd.f32 %v825, %v947
    %v949 = vpop.f32.mrb[0].mxu0
    %950 = vmatprep.mubr.f32.mxu0 0.0
    %951 = vmatmul.mubr.f32.gmra.mrb[0].mxu0 %v849
    %v952 = vpop.f32.mrb[0].mxu0
    %v953 = vadd.f32 %v825, %v952
    %v954 = vpop.f32.mrb[0].mxu0
    %955 = vdwg.mxu0
    %956 = vst.msk [vmem:[#allocation6] sm:$0xff] %vm149, %v73
    %957 = vst.msk [vmem:[#allocation6 + $0x8] sm:$0xff] %vm149, %v74
    %958 = vst.msk [vmem:[#allocation6 + $0x10] sm:$0xff] %vm149, %v75
    %959 = vst.msk [vmem:[#allocation6 + $0x18] sm:$0xff] %vm149, %v76
    %960 = vst.msk [vmem:[#allocation6 + $0x20] sm:$0xff] %vm149, %v77
    %961 = vst.msk [vmem:[#allocation6 + $0x28] sm:$0xff] %vm149, %v78
    %962 = vst.msk [vmem:[#allocation6 + $0x30] sm:$0xff] %vm149, %v79
    %963 = vst.msk [vmem:[#allocation6 + $0x38] sm:$0xff] %vm149, %v80
    %964 = vst.msk [vmem:[#allocation6 + $0x40] sm:$0xff] %vm149, %v81
    %965 = vst.msk [vmem:[#allocation6 + $0x48] sm:$0xff] %vm149, %v82
    %966 = vst.msk [vmem:[#allocation6 + $0x50] sm:$0xff] %vm149, %v83
    %967 = vst.msk [vmem:[#allocation6 + $0x58] sm:$0xff] %vm149, %v84
    %968 = vst.msk [vmem:[#allocation6 + $0x60] sm:$0xff] %vm149, %v85
    %969 = vst.msk [vmem:[#allocation6 + $0x68] sm:$0xff] %vm149, %v86
    %970 = vst.msk [vmem:[#allocation6 + $0x70] sm:$0xff] %vm149, %v87
    %971 = vst.msk [vmem:[#allocation6 + $0x78] sm:$0xff] %vm149, %v88
    %v972 = vld [vmem:[#allocation6] ss:$2 sm:$0xff]
    %s973 = scalar_lea.vmem [#allocation6], 16
    %v974 = vld [vmem:[%s973] ss:$2 sm:$0xff]
    %s975 = scalar_lea.vmem [#allocation6], 32
    %v976 = vld [vmem:[%s975] ss:$2 sm:$0xff]
    %s977 = scalar_lea.vmem [#allocation6], 48
    %v978 = vld [vmem:[%s977] ss:$2 sm:$0xff]
    %s979 = scalar_lea.vmem [#allocation6], 64
    %v980 = vld [vmem:[%s979] ss:$2 sm:$0xff]
    %s981 = scalar_lea.vmem [#allocation6], 80
    %v982 = vld [vmem:[%s981] ss:$2 sm:$0xff]
    %s983 = scalar_lea.vmem [#allocation6], 96
    %v984 = vld [vmem:[%s983] ss:$2 sm:$0xff]
    %s985 = scalar_lea.vmem [#allocation6], 112
    %v986 = vld [vmem:[%s985] ss:$2 sm:$0xff]
    %s987 = scalar_lea.vmem [#allocation6], 1
    %v988 = vld [vmem:[%s987] ss:$2 sm:$0xff]
    %s989 = scalar_lea.vmem [#allocation6], 17
    %v990 = vld [vmem:[%s989] ss:$2 sm:$0xff]
    %s991 = scalar_lea.vmem [#allocation6], 33
    %v992 = vld [vmem:[%s991] ss:$2 sm:$0xff]
    %s993 = scalar_lea.vmem [#allocation6], 49
    %v994 = vld [vmem:[%s993] ss:$2 sm:$0xff]
    %s995 = scalar_lea.vmem [#allocation6], 65
    %v996 = vld [vmem:[%s995] ss:$2 sm:$0xff]
    %s997 = scalar_lea.vmem [#allocation6], 81
    %v998 = vld [vmem:[%s997] ss:$2 sm:$0xff]
    %s999 = scalar_lea.vmem [#allocation6], 97
    %v1000 = vld [vmem:[%s999] ss:$2 sm:$0xff]
    %s1001 = scalar_lea.vmem [#allocation6], 113
    %v1002 = vld [vmem:[%s1001] ss:$2 sm:$0xff]
    %v1003 = vmax.f32 %v972, %v988
    %v1004 = vmax.f32 %v974, %v990
    %v1005 = vmax.f32 %v976, %v992
    %v1006 = vmax.f32 %v978, %v994
    %v1007 = vmax.f32 %v980, %v996
    %v1008 = vmax.f32 %v982, %v998
    %v1009 = vmax.f32 %v984, %v1000
    %v1010 = vmax.f32 %v986, %v1002
    %v1011 = vadd.f32 %v918, %v1003
    %v1012 = vadd.f32 %v923, %v1004
    %v1013 = vadd.f32 %v928, %v1005
    %v1014 = vadd.f32 %v933, %v1006
    %v1015 = vadd.f32 %v938, %v1007
    %v1016 = vadd.f32 %v943, %v1008
    %v1017 = vadd.f32 %v948, %v1009
    %v1018 = vadd.f32 %v953, %v1010
    %1019 = vxpose.xlu0.b32.start [1/16] %v1011, 128
    %1020 = vxpose.xlu0.b32.cont [2/16] %v1012, 128
    %1021 = vxpose.xlu0.b32.cont [3/16] %v1013, 128
    %1022 = vxpose.xlu0.b32.cont [4/16] %v1014, 128
    %1023 = vxpose.xlu0.b32.cont [5/16] %v1015, 128
    %1024 = vxpose.xlu0.b32.cont [6/16] %v1016, 128
    %1025 = vxpose.xlu0.b32.cont [7/16] %v1017, 128
    %1026 = vxpose.xlu0.b32.cont [8/16] %v1018, 128
    %1027 = vxpose.xlu0.b32.cont [9/16] 0.0, 128
    %1028 = vxpose.xlu0.b32.cont [10/16] 0.0, 128
    %1029 = vxpose.xlu0.b32.cont [11/16] 0.0, 128
    %1030 = vxpose.xlu0.b32.cont [12/16] 0.0, 128
    %1031 = vxpose.xlu0.b32.cont [13/16] 0.0, 128
    %1032 = vxpose.xlu0.b32.cont [14/16] 0.0, 128
    %1033 = vxpose.xlu0.b32.cont [15/16] 0.0, 128
    %1034 = vxpose.xlu0.b32.end [16/16] 0.0, 128
    %v1035 = vpop.trf.xlu0
    %v1036 = vpop.trf.xlu0
    %v1037 = vpop.trf.xlu0
    %v1038 = vpop.trf.xlu0
    %v1039 = vpop.trf.xlu0
    %v1040 = vpop.trf.xlu0
    %v1041 = vpop.trf.xlu0
    %v1042 = vpop.trf.xlu0
    %v1043 = vpop.trf.xlu0
    %v1044 = vpop.trf.xlu0
    %v1045 = vpop.trf.xlu0
    %v1046 = vpop.trf.xlu0
    %v1047 = vpop.trf.xlu0
    %v1048 = vpop.trf.xlu0
    %v1049 = vpop.trf.xlu0
    %v1050 = vpop.trf.xlu0
    %vm1051 = vcmask 523264
    %1052 = vst.msk [vmem:[#allocation7] sm:$0xff] %vm1051, %v1035
    %s1053 = scalar_lea.vmem %s0, 8
    %v1054 = vld [vmem:[%s1053] sm:$0xff]
    %1055 = vxpose.xlu0.b32.start [1/16] %v1054, 128
    %1056 = vxpose.xlu0.b32.cont [2/16] 0.0, 128
    %1057 = vxpose.xlu0.b32.cont [3/16] 0.0, 128
    %1058 = vxpose.xlu0.b32.cont [4/16] 0.0, 128
    %1059 = vxpose.xlu0.b32.cont [5/16] 0.0, 128
    %1060 = vxpose.xlu0.b32.cont [6/16] 0.0, 128
    %1061 = vxpose.xlu0.b32.cont [7/16] 0.0, 128
    %1062 = vxpose.xlu0.b32.cont [8/16] 0.0, 128
    %1063 = vxpose.xlu0.b32.cont [9/16] 0.0, 128
    %1064 = vxpose.xlu0.b32.cont [10/16] 0.0, 128
    %1065 = vxpose.xlu0.b32.cont [11/16] 0.0, 128
    %1066 = vxpose.xlu0.b32.cont [12/16] 0.0, 128
    %1067 = vxpose.xlu0.b32.cont [13/16] 0.0, 128
    %1068 = vxpose.xlu0.b32.cont [14/16] 0.0, 128
    %1069 = vxpose.xlu0.b32.cont [15/16] 0.0, 128
    %1070 = vxpose.xlu0.b32.end [16/16] 0.0, 128
    %v1071 = vpop.trf.xlu0
    %v1072 = vpop.trf.xlu0
    %v1073 = vpop.trf.xlu0
    %v1074 = vpop.trf.xlu0
    %v1075 = vpop.trf.xlu0
    %v1076 = vpop.trf.xlu0
    %v1077 = vpop.trf.xlu0
    %v1078 = vpop.trf.xlu0
    %v1079 = vpop.trf.xlu0
    %v1080 = vpop.trf.xlu0
    %v1081 = vpop.trf.xlu0
    %v1082 = vpop.trf.xlu0
    %v1083 = vpop.trf.xlu0
    %v1084 = vpop.trf.xlu0
    %v1085 = vpop.trf.xlu0
    %v1086 = vpop.trf.xlu0
    %v1087 = vmul.f32 %v1071, %v93
    %v1088 = vmul.f32 %v1072, %v93
    %v1089 = vmul.f32 %v1073, %v93
    %v1090 = vmul.f32 %v1074, %v93
    %v1091 = vmul.f32 %v1075, %v93
    %v1092 = vmul.f32 %v1076, %v93
    %v1093 = vmul.f32 %v1077, %v93
    %v1094 = vmul.f32 %v1078, %v93
    %v1095 = vmul.f32 %v1079, %v93
    %v1096 = vmul.f32 %v1080, %v93
    %v1097 = vmul.f32 %v1081, %v93
    %v1098 = vmul.f32 %v1082, %v93
    %v1099 = vmul.f32 %v1083, %v93
    %v1100 = vmul.f32 %v1084, %v93
    %v1101 = vmul.f32 %v1085, %v93
    %v1102 = vmul.f32 %v1086, %v93
    %v1103 = vadd.f32 %v1087, %v115
    %v1104 = vadd.f32 %v1088, %v115
    %v1105 = vadd.f32 %v1089, %v115
    %v1106 = vadd.f32 %v1090, %v115
    %v1107 = vadd.f32 %v1091, %v115
    %v1108 = vadd.f32 %v1092, %v115
    %v1109 = vadd.f32 %v1093, %v115
    %v1110 = vadd.f32 %v1094, %v115
    %v1111 = vadd.f32 %v1095, %v115
    %v1112 = vadd.f32 %v1096, %v115
    %v1113 = vadd.f32 %v1097, %v115
    %v1114 = vadd.f32 %v1098, %v115
    %v1115 = vadd.f32 %v1099, %v115
    %v1116 = vadd.f32 %v1100, %v115
    %v1117 = vadd.f32 %v1101, %v115
    %v1118 = vadd.f32 %v1102, %v115
    %v1119 = vmax.f32 %v1103, 0.0
    %v1120 = vmax.f32 %v1104, 0.0
    %v1121 = vmax.f32 %v1105, 0.0
    %v1122 = vmax.f32 %v1106, 0.0
    %v1123 = vmax.f32 %v1107, 0.0
    %v1124 = vmax.f32 %v1108, 0.0
    %v1125 = vmax.f32 %v1109, 0.0
    %v1126 = vmax.f32 %v1110, 0.0
    %v1127 = vmax.f32 %v1111, 0.0
    %v1128 = vmax.f32 %v1112, 0.0
    %v1129 = vmax.f32 %v1113, 0.0
    %v1130 = vmax.f32 %v1114, 0.0
    %v1131 = vmax.f32 %v1115, 0.0
    %v1132 = vmax.f32 %v1116, 0.0
    %v1133 = vmax.f32 %v1117, 0.0
    %v1134 = vmax.f32 %v1118, 0.0
    %1135 = vst.msk [vmem:[#allocation2 + $0x1] sm:$0xff] %vm149, %v1119
    %1136 = vst.msk [vmem:[#allocation2 + $0x9] sm:$0xff] %vm149, %v1120
    %1137 = vst.msk [vmem:[#allocation2 + $0x11] sm:$0xff] %vm149, %v1121
    %1138 = vst.msk [vmem:[#allocation2 + $0x19] sm:$0xff] %vm149, %v1122
    %1139 = vst.msk [vmem:[#allocation2 + $0x21] sm:$0xff] %vm149, %v1123
    %1140 = vst.msk [vmem:[#allocation2 + $0x29] sm:$0xff] %vm149, %v1124
    %1141 = vst.msk [vmem:[#allocation2 + $0x31] sm:$0xff] %vm149, %v1125
    %1142 = vst.msk [vmem:[#allocation2 + $0x39] sm:$0xff] %vm149, %v1126
    %1143 = vst.msk [vmem:[#allocation2 + $0x41] sm:$0xff] %vm149, %v1127
    %1144 = vst.msk [vmem:[#allocation2 + $0x49] sm:$0xff] %vm149, %v1128
    %1145 = vst.msk [vmem:[#allocation2 + $0x51] sm:$0xff] %vm149, %v1129
    %1146 = vst.msk [vmem:[#allocation2 + $0x59] sm:$0xff] %vm149, %v1130
    %1147 = vst.msk [vmem:[#allocation2 + $0x61] sm:$0xff] %vm149, %v1131
    %1148 = vst.msk [vmem:[#allocation2 + $0x69] sm:$0xff] %vm149, %v1132
    %1149 = vst.msk [vmem:[#allocation2 + $0x71] sm:$0xff] %vm149, %v1133
    %1150 = vst.msk [vmem:[#allocation2 + $0x79] sm:$0xff] %vm149, %v1134
    %v1151 = vld [vmem:[#allocation2] ss:$2 sm:$0xff]
    %v1152 = vld [vmem:[%s167] ss:$2 sm:$0xff]
    %v1153 = vld [vmem:[%s169] ss:$2 sm:$0xff]
    %v1154 = vld [vmem:[%s171] ss:$2 sm:$0xff]
    %v1155 = vld [vmem:[%s173] ss:$2 sm:$0xff]
    %v1156 = vld [vmem:[%s175] ss:$2 sm:$0xff]
    %v1157 = vld [vmem:[%s177] ss:$2 sm:$0xff]
    %v1158 = vld [vmem:[%s179] ss:$2 sm:$0xff]
    %1159 = vst.msk [vmem:[#allocation3] sm:$0xff] %vm149, %v1151
    %1160 = vst.msk [vmem:[#allocation3 + $0x8] sm:$0xff] %vm149, %v1152
    %1161 = vst.msk [vmem:[#allocation3 + $0x10] sm:$0xff] %vm149, %v1153
    %1162 = vst.msk [vmem:[#allocation3 + $0x18] sm:$0xff] %vm149, %v1154
    %1163 = vst.msk [vmem:[#allocation3 + $0x20] sm:$0xff] %vm149, %v1155
    %1164 = vst.msk [vmem:[#allocation3 + $0x28] sm:$0xff] %vm149, %v1156
    %1165 = vst.msk [vmem:[#allocation3 + $0x30] sm:$0xff] %vm149, %v1157
    %1166 = vst.msk [vmem:[#allocation3 + $0x38] sm:$0xff] %vm149, %v1158
    %v1167 = vld [vmem:[%s189] ss:$2 sm:$0xff]
    %v1168 = vld [vmem:[%s191] ss:$2 sm:$0xff]
    %v1169 = vld [vmem:[%s193] ss:$2 sm:$0xff]
    %v1170 = vld [vmem:[%s195] ss:$2 sm:$0xff]
    %v1171 = vld [vmem:[%s197] ss:$2 sm:$0xff]
    %v1172 = vld [vmem:[%s199] ss:$2 sm:$0xff]
    %v1173 = vld [vmem:[%s201] ss:$2 sm:$0xff]
    %v1174 = vld [vmem:[%s203] ss:$2 sm:$0xff]
    %1183 = vrot.lane.b32.xlu0 %v1167, 8
    %v1184 = vpop.permute.xlu0 %1183
    %1185 = vrot.lane.b32.xlu0 %v1168, 8
    %v1186 = vpop.permute.xlu0 %1185
    %1187 = vrot.lane.b32.xlu0 %v1169, 8
    %v1188 = vpop.permute.xlu0 %1187
    %1189 = vrot.lane.b32.xlu0 %v1170, 8
    %v1190 = vpop.permute.xlu0 %1189
    %1191 = vrot.lane.b32.xlu0 %v1171, 8
    %v1192 = vpop.permute.xlu0 %1191
    %1193 = vrot.lane.b32.xlu0 %v1172, 8
    %v1194 = vpop.permute.xlu0 %1193
    %1195 = vrot.lane.b32.xlu0 %v1173, 8
    %v1196 = vpop.permute.xlu0 %1195
    %1197 = vrot.lane.b32.xlu0 %v1174, 8
    %v1198 = vpop.permute.xlu0 %1197
    %1207 = vst.msk [vmem:[#allocation3] sm:$0xff] %vm237, %v1184
    %1208 = vst.msk [vmem:[#allocation3 + $0x8] sm:$0xff] %vm237, %v1186
    %1209 = vst.msk [vmem:[#allocation3 + $0x10] sm:$0xff] %vm237, %v1188
    %1210 = vst.msk [vmem:[#allocation3 + $0x18] sm:$0xff] %vm237, %v1190
    %1211 = vst.msk [vmem:[#allocation3 + $0x20] sm:$0xff] %vm237, %v1192
    %1212 = vst.msk [vmem:[#allocation3 + $0x28] sm:$0xff] %vm237, %v1194
    %1213 = vst.msk [vmem:[#allocation3 + $0x30] sm:$0xff] %vm237, %v1196
    %1214 = vst.msk [vmem:[#allocation3 + $0x38] sm:$0xff] %vm237, %v1198
    %v1215 = vld [vmem:[%s246] ss:$2 sm:$0xff]
    %v1216 = vld [vmem:[%s248] ss:$2 sm:$0xff]
    %v1217 = vld [vmem:[%s250] ss:$2 sm:$0xff]
    %v1218 = vld [vmem:[%s252] ss:$2 sm:$0xff]
    %v1219 = vld [vmem:[%s254] ss:$2 sm:$0xff]
    %v1220 = vld [vmem:[%s256] ss:$2 sm:$0xff]
    %v1221 = vld [vmem:[%s258] ss:$2 sm:$0xff]
    %v1222 = vld [vmem:[%s260] ss:$2 sm:$0xff]
    %1231 = vrot.lane.b32.xlu0 %v1215, 16
    %v1232 = vpop.permute.xlu0 %1231
    %1233 = vrot.lane.b32.xlu0 %v1216, 16
    %v1234 = vpop.permute.xlu0 %1233
    %1235 = vrot.lane.b32.xlu0 %v1217, 16
    %v1236 = vpop.permute.xlu0 %1235
    %1237 = vrot.lane.b32.xlu0 %v1218, 16
    %v1238 = vpop.permute.xlu0 %1237
    %1239 = vrot.lane.b32.xlu0 %v1219, 16
    %v1240 = vpop.permute.xlu0 %1239
    %1241 = vrot.lane.b32.xlu0 %v1220, 16
    %v1242 = vpop.permute.xlu0 %1241
    %1243 = vrot.lane.b32.xlu0 %v1221, 16
    %v1244 = vpop.permute.xlu0 %1243
    %1245 = vrot.lane.b32.xlu0 %v1222, 16
    %v1246 = vpop.permute.xlu0 %1245
    %1255 = vst.msk [vmem:[#allocation3] sm:$0xff] %vm294, %v1232
    %1256 = vst.msk [vmem:[#allocation3 + $0x8] sm:$0xff] %vm294, %v1234
    %1257 = vst.msk [vmem:[#allocation3 + $0x10] sm:$0xff] %vm294, %v1236
    %1258 = vst.msk [vmem:[#allocation3 + $0x18] sm:$0xff] %vm294, %v1238
    %1259 = vst.msk [vmem:[#allocation3 + $0x20] sm:$0xff] %vm294, %v1240
    %1260 = vst.msk [vmem:[#allocation3 + $0x28] sm:$0xff] %vm294, %v1242
    %1261 = vst.msk [vmem:[#allocation3 + $0x30] sm:$0xff] %vm294, %v1244
    %1262 = vst.msk [vmem:[#allocation3 + $0x38] sm:$0xff] %vm294, %v1246
    %v1263 = vld [vmem:[%s303] ss:$2 sm:$0xff]
    %v1264 = vld [vmem:[%s305] ss:$2 sm:$0xff]
    %v1265 = vld [vmem:[%s307] ss:$2 sm:$0xff]
    %v1266 = vld [vmem:[%s309] ss:$2 sm:$0xff]
    %v1267 = vld [vmem:[%s311] ss:$2 sm:$0xff]
    %v1268 = vld [vmem:[%s313] ss:$2 sm:$0xff]
    %v1269 = vld [vmem:[%s315] ss:$2 sm:$0xff]
    %v1270 = vld [vmem:[%s317] ss:$2 sm:$0xff]
    %1279 = vrot.lane.b32.xlu0 %v1263, 24
    %v1280 = vpop.permute.xlu0 %1279
    %1281 = vrot.lane.b32.xlu0 %v1264, 24
    %v1282 = vpop.permute.xlu0 %1281
    %1283 = vrot.lane.b32.xlu0 %v1265, 24
    %v1284 = vpop.permute.xlu0 %1283
    %1285 = vrot.lane.b32.xlu0 %v1266, 24
    %v1286 = vpop.permute.xlu0 %1285
    %1287 = vrot.lane.b32.xlu0 %v1267, 24
    %v1288 = vpop.permute.xlu0 %1287
    %1289 = vrot.lane.b32.xlu0 %v1268, 24
    %v1290 = vpop.permute.xlu0 %1289
    %1291 = vrot.lane.b32.xlu0 %v1269, 24
    %v1292 = vpop.permute.xlu0 %1291
    %1293 = vrot.lane.b32.xlu0 %v1270, 24
    %v1294 = vpop.permute.xlu0 %1293
    %1303 = vst.msk [vmem:[#allocation3] sm:$0xff] %vm351, %v1280
    %1304 = vst.msk [vmem:[#allocation3 + $0x8] sm:$0xff] %vm351, %v1282
    %1305 = vst.msk [vmem:[#allocation3 + $0x10] sm:$0xff] %vm351, %v1284
    %1306 = vst.msk [vmem:[#allocation3 + $0x18] sm:$0xff] %vm351, %v1286
    %1307 = vst.msk [vmem:[#allocation3 + $0x20] sm:$0xff] %vm351, %v1288
    %1308 = vst.msk [vmem:[#allocation3 + $0x28] sm:$0xff] %vm351, %v1290
    %1309 = vst.msk [vmem:[#allocation3 + $0x30] sm:$0xff] %vm351, %v1292
    %1310 = vst.msk [vmem:[#allocation3 + $0x38] sm:$0xff] %vm351, %v1294
    %v1311 = vld [vmem:[%s360] ss:$2 sm:$0xff]
    %v1312 = vld [vmem:[%s362] ss:$2 sm:$0xff]
    %v1313 = vld [vmem:[%s364] ss:$2 sm:$0xff]
    %v1314 = vld [vmem:[%s366] ss:$2 sm:$0xff]
    %v1315 = vld [vmem:[%s368] ss:$2 sm:$0xff]
    %v1316 = vld [vmem:[%s370] ss:$2 sm:$0xff]
    %v1317 = vld [vmem:[%s372] ss:$2 sm:$0xff]
    %v1318 = vld [vmem:[%s374] ss:$2 sm:$0xff]
    %1327 = vrot.lane.b32.xlu0 %v1311, 32
    %v1328 = vpop.permute.xlu0 %1327
    %1329 = vrot.lane.b32.xlu0 %v1312, 32
    %v1330 = vpop.permute.xlu0 %1329
    %1331 = vrot.lane.b32.xlu0 %v1313, 32
    %v1332 = vpop.permute.xlu0 %1331
    %1333 = vrot.lane.b32.xlu0 %v1314, 32
    %v1334 = vpop.permute.xlu0 %1333
    %1335 = vrot.lane.b32.xlu0 %v1315, 32
    %v1336 = vpop.permute.xlu0 %1335
    %1337 = vrot.lane.b32.xlu0 %v1316, 32
    %v1338 = vpop.permute.xlu0 %1337
    %1339 = vrot.lane.b32.xlu0 %v1317, 32
    %v1340 = vpop.permute.xlu0 %1339
    %1341 = vrot.lane.b32.xlu0 %v1318, 32
    %v1342 = vpop.permute.xlu0 %1341
    %1351 = vst.msk [vmem:[#allocation3] sm:$0xff] %vm408, %v1328
    %1352 = vst.msk [vmem:[#allocation3 + $0x8] sm:$0xff] %vm408, %v1330
    %1353 = vst.msk [vmem:[#allocation3 + $0x10] sm:$0xff] %vm408, %v1332
    %1354 = vst.msk [vmem:[#allocation3 + $0x18] sm:$0xff] %vm408, %v1334
    %1355 = vst.msk [vmem:[#allocation3 + $0x20] sm:$0xff] %vm408, %v1336
    %1356 = vst.msk [vmem:[#allocation3 + $0x28] sm:$0xff] %vm408, %v1338
    %1357 = vst.msk [vmem:[#allocation3 + $0x30] sm:$0xff] %vm408, %v1340
    %1358 = vst.msk [vmem:[#allocation3 + $0x38] sm:$0xff] %vm408, %v1342
    %v1359 = vld [vmem:[#allocation3] sm:$0xff]
    %v1360 = vld [vmem:[#allocation3 + $0x8] sm:$0xff]
    %v1361 = vld [vmem:[#allocation3 + $0x10] sm:$0xff]
    %v1362 = vld [vmem:[#allocation3 + $0x18] sm:$0xff]
    %v1363 = vld [vmem:[#allocation3 + $0x20] sm:$0xff]
    %v1364 = vld [vmem:[#allocation3 + $0x28] sm:$0xff]
    %v1365 = vld [vmem:[#allocation3 + $0x30] sm:$0xff]
    %v1366 = vld [vmem:[#allocation3 + $0x38] sm:$0xff]
    %v1368 = vsel %vm431, %v1359, 0
    %v1371 = vsel %vm431, %v1360, 0
    %v1374 = vsel %vm431, %v1361, 0
    %v1377 = vsel %vm431, %v1362, 0
    %v1380 = vsel %vm431, %v1363, 0
    %v1383 = vsel %vm431, %v1364, 0
    %v1386 = vsel %vm431, %v1365, 0
    %v1389 = vsel %vm431, %v1366, 0
    %1391 = vmatprep.subr.mxu0 0.0
    %1392 = vmatpush1.msra.mxu0 %v44
    %1393 = vmatprep.subr.mxu0 0.0
    %1394 = vmatpush1.msra.mxu0 %v45
    %1395 = vmatprep.subr.mxu0 0.0
    %1396 = vmatpush1.msra.mxu0 %v46
    %1397 = vmatprep.subr.mxu0 0.0
    %1398 = vmatpush1.msra.mxu0 %v47
    %1399 = vmatprep.subr.mxu0 0.0
    %1400 = vmatpush1.msra.mxu0 %v48
    %1401 = vmatprep.subr.mxu0 0.0
    %1402 = vmatpush1.msra.mxu0 0.0
    %1403 = vmatprep.subr.mxu0 0.0
    %1404 = vmatpush1.msra.mxu0 0.0
    %1405 = vmatprep.subr.mxu0 0.0
    %1406 = vmatpush1.msra.mxu0 0.0
    %1407 = vmatprep.subr.mxu0 0.0
    %1408 = vmatpush1.msra.mxu0 0.0
    %1409 = vmatprep.subr.mxu0 0.0
    %1410 = vmatpush1.msra.mxu0 0.0
    %1411 = vmatprep.subr.mxu0 0.0
    %1412 = vmatpush1.msra.mxu0 0.0
    %1413 = vmatprep.subr.mxu0 0.0
    %1414 = vmatpush1.msra.mxu0 0.0
    %1415 = vmatprep.subr.mxu0 0.0
    %1416 = vmatpush1.msra.mxu0 0.0
    %1417 = vmatprep.subr.mxu0 0.0
    %1418 = vmatpush1.msra.mxu0 0.0
    %1419 = vmatprep.subr.mxu0 0.0
    %1420 = vmatpush1.msra.mxu0 0.0
    %1421 = vmatprep.subr.mxu0 0.0
    %1422 = vmatpush1.msra.mxu0 0.0
    %1423 = vmatprep.subr.mxu0 0.0
    %1424 = vmatpush1.msra.mxu0 0.0
    %1425 = vmatprep.subr.mxu0 0.0
    %1426 = vmatpush1.msra.mxu0 0.0
    %1427 = vmatprep.subr.mxu0 0.0
    %1428 = vmatpush1.msra.mxu0 0.0
    %1429 = vmatprep.subr.mxu0 0.0
    %1430 = vmatpush1.msra.mxu0 0.0
    %1431 = vmatprep.subr.mxu0 0.0
    %1432 = vmatpush1.msra.mxu0 0.0
    %1433 = vmatprep.subr.mxu0 0.0
    %1434 = vmatpush1.msra.mxu0 0.0
    %1435 = vmatprep.subr.mxu0 0.0
    %1436 = vmatpush1.msra.mxu0 0.0
    %1437 = vmatprep.subr.mxu0 0.0
    %1438 = vmatpush1.msra.mxu0 0.0
    %1439 = vmatprep.subr.mxu0 0.0
    %1440 = vmatpush1.msra.mxu0 0.0
    %1441 = vmatprep.subr.mxu0 0.0
    %1442 = vmatpush1.msra.mxu0 0.0
    %1443 = vmatprep.subr.mxu0 0.0
    %1444 = vmatpush1.msra.mxu0 0.0
    %1445 = vmatprep.subr.mxu0 0.0
    %1446 = vmatpush1.msra.mxu0 0.0
    %1447 = vmatprep.subr.mxu0 0.0
    %1448 = vmatpush1.msra.mxu0 0.0
    %1449 = vmatprep.subr.mxu0 0.0
    %1450 = vmatpush1.msra.mxu0 0.0
    %1451 = vmatprep.subr.mxu0 0.0
    %1452 = vmatpush1.msra.mxu0 0.0
    %1453 = vmatprep.subr.mxu0 0.0
    %1454 = vmatpush1.msra.mxu0 0.0
    %1455 = vmatprep.mubr.f32.mxu0 0.0
    %1456 = vmatmul.mubr.f32.gmra.mrb[0].mxu0 %v1368
    %v1457 = vpop.f32.mrb[0].mxu0
    %v1458 = vadd.f32 %v429, %v1457
    %v1459 = vpop.f32.mrb[0].mxu0
    %1460 = vmatprep.mubr.f32.mxu0 0.0
    %1461 = vmatmul.mubr.f32.gmra.mrb[0].mxu0 %v1371
    %v1462 = vpop.f32.mrb[0].mxu0
    %v1463 = vadd.f32 %v429, %v1462
    %v1464 = vpop.f32.mrb[0].mxu0
    %1465 = vmatprep.mubr.f32.mxu0 0.0
    %1466 = vmatmul.mubr.f32.gmra.mrb[0].mxu0 %v1374
    %v1467 = vpop.f32.mrb[0].mxu0
    %v1468 = vadd.f32 %v429, %v1467
    %v1469 = vpop.f32.mrb[0].mxu0
    %1470 = vmatprep.mubr.f32.mxu0 0.0
    %1471 = vmatmul.mubr.f32.gmra.mrb[0].mxu0 %v1377
    %v1472 = vpop.f32.mrb[0].mxu0
    %v1473 = vadd.f32 %v429, %v1472
    %v1474 = vpop.f32.mrb[0].mxu0
    %1475 = vmatprep.mubr.f32.mxu0 0.0
    %1476 = vmatmul.mubr.f32.gmra.mrb[0].mxu0 %v1380
    %v1477 = vpop.f32.mrb[0].mxu0
    %v1478 = vadd.f32 %v429, %v1477
    %v1479 = vpop.f32.mrb[0].mxu0
    %1480 = vmatprep.mubr.f32.mxu0 0.0
    %1481 = vmatmul.mubr.f32.gmra.mrb[0].mxu0 %v1383
    %v1482 = vpop.f32.mrb[0].mxu0
    %v1483 = vadd.f32 %v429, %v1482
    %v1484 = vpop.f32.mrb[0].mxu0
    %1485 = vmatprep.mubr.f32.mxu0 0.0
    %1486 = vmatmul.mubr.f32.gmra.mrb[0].mxu0 %v1386
    %v1487 = vpop.f32.mrb[0].mxu0
    %v1488 = vadd.f32 %v429, %v1487
    %v1489 = vpop.f32.mrb[0].mxu0
    %1490 = vmatprep.mubr.f32.mxu0 0.0
    %1491 = vmatmul.mubr.f32.gmra.mrb[0].mxu0 %v1389
    %v1492 = vpop.f32.mrb[0].mxu0
    %v1493 = vadd.f32 %v429, %v1492
    %v1494 = vpop.f32.mrb[0].mxu0
    %1495 = vdwg.mxu0
    %v1496 = vmul.f32 %v1458, %v565
    %v1497 = vmul.f32 %v1463, %v565
    %v1498 = vmul.f32 %v1468, %v565
    %v1499 = vmul.f32 %v1473, %v565
    %v1500 = vmul.f32 %v1478, %v565
    %v1501 = vmul.f32 %v1483, %v565
    %v1502 = vmul.f32 %v1488, %v565
    %v1503 = vmul.f32 %v1493, %v565
    %v1504 = vadd.f32 %v1496, %v579
    %v1505 = vadd.f32 %v1497, %v579
    %v1506 = vadd.f32 %v1498, %v579
    %v1507 = vadd.f32 %v1499, %v579
    %v1508 = vadd.f32 %v1500, %v579
    %v1509 = vadd.f32 %v1501, %v579
    %v1510 = vadd.f32 %v1502, %v579
    %v1511 = vadd.f32 %v1503, %v579
    %v1512 = vmax.f32 %v1504, 0.0
    %v1513 = vmax.f32 %v1505, 0.0
    %v1514 = vmax.f32 %v1506, 0.0
    %v1515 = vmax.f32 %v1507, 0.0
    %v1516 = vmax.f32 %v1508, 0.0
    %v1517 = vmax.f32 %v1509, 0.0
    %v1518 = vmax.f32 %v1510, 0.0
    %v1519 = vmax.f32 %v1511, 0.0
    %1520 = vst.msk [vmem:[#allocation4 + $0x2] sm:$0xff] %vm149, %v1512
    %1521 = vst.msk [vmem:[#allocation4 + $0xa] sm:$0xff] %vm149, %v1513
    %1522 = vst.msk [vmem:[#allocation4 + $0x12] sm:$0xff] %vm149, %v1514
    %1523 = vst.msk [vmem:[#allocation4 + $0x1a] sm:$0xff] %vm149, %v1515
    %1524 = vst.msk [vmem:[#allocation4 + $0x22] sm:$0xff] %vm149, %v1516
    %1525 = vst.msk [vmem:[#allocation4 + $0x2a] sm:$0xff] %vm149, %v1517
    %1526 = vst.msk [vmem:[#allocation4 + $0x32] sm:$0xff] %vm149, %v1518
    %1527 = vst.msk [vmem:[#allocation4 + $0x3a] sm:$0xff] %vm149, %v1519
    %v1528 = vld [vmem:[#allocation4] sm:$0xff]
    %v1529 = vld [vmem:[#allocation4 + $0x8] sm:$0xff]
    %v1530 = vld [vmem:[#allocation4 + $0x10] sm:$0xff]
    %v1531 = vld [vmem:[#allocation4 + $0x18] sm:$0xff]
    %v1532 = vld [vmem:[#allocation4 + $0x20] sm:$0xff]
    %v1533 = vld [vmem:[#allocation4 + $0x28] sm:$0xff]
    %v1534 = vld [vmem:[#allocation4 + $0x30] sm:$0xff]
    %v1535 = vld [vmem:[#allocation4 + $0x38] sm:$0xff]
    %1536 = vst.msk [vmem:[#allocation5] sm:$0xff] %vm149, %v1528
    %1537 = vst.msk [vmem:[#allocation5 + $0x8] sm:$0xff] %vm149, %v1529
    %1538 = vst.msk [vmem:[#allocation5 + $0x10] sm:$0xff] %vm149, %v1530
    %1539 = vst.msk [vmem:[#allocation5 + $0x18] sm:$0xff] %vm149, %v1531
    %1540 = vst.msk [vmem:[#allocation5 + $0x20] sm:$0xff] %vm149, %v1532
    %1541 = vst.msk [vmem:[#allocation5 + $0x28] sm:$0xff] %vm149, %v1533
    %1542 = vst.msk [vmem:[#allocation5 + $0x30] sm:$0xff] %vm149, %v1534
    %1543 = vst.msk [vmem:[#allocation5 + $0x38] sm:$0xff] %vm149, %v1535
    %v1544 = vld [vmem:[#allocation4 + $0x1] sm:$0xff]
    %v1545 = vld [vmem:[#allocation4 + $0x9] sm:$0xff]
    %v1546 = vld [vmem:[#allocation4 + $0x11] sm:$0xff]
    %v1547 = vld [vmem:[#allocation4 + $0x19] sm:$0xff]
    %v1548 = vld [vmem:[#allocation4 + $0x21] sm:$0xff]
    %v1549 = vld [vmem:[#allocation4 + $0x29] sm:$0xff]
    %v1550 = vld [vmem:[#allocation4 + $0x31] sm:$0xff]
    %v1551 = vld [vmem:[#allocation4 + $0x39] sm:$0xff]
    %1560 = vrot.lane.b32.xlu0 %v1544, 8
    %v1561 = vpop.permute.xlu0 %1560
    %1562 = vrot.lane.b32.xlu0 %v1545, 8
    %v1563 = vpop.permute.xlu0 %1562
    %1564 = vrot.lane.b32.xlu0 %v1546, 8
    %v1565 = vpop.permute.xlu0 %1564
    %1566 = vrot.lane.b32.xlu0 %v1547, 8
    %v1567 = vpop.permute.xlu0 %1566
    %1568 = vrot.lane.b32.xlu0 %v1548, 8
    %v1569 = vpop.permute.xlu0 %1568
    %1570 = vrot.lane.b32.xlu0 %v1549, 8
    %v1571 = vpop.permute.xlu0 %1570
    %1572 = vrot.lane.b32.xlu0 %v1550, 8
    %v1573 = vpop.permute.xlu0 %1572
    %1574 = vrot.lane.b32.xlu0 %v1551, 8
    %v1575 = vpop.permute.xlu0 %1574
    %1584 = vst.msk [vmem:[#allocation5] sm:$0xff] %vm237, %v1561
    %1585 = vst.msk [vmem:[#allocation5 + $0x8] sm:$0xff] %vm237, %v1563
    %1586 = vst.msk [vmem:[#allocation5 + $0x10] sm:$0xff] %vm237, %v1565
    %1587 = vst.msk [vmem:[#allocation5 + $0x18] sm:$0xff] %vm237, %v1567
    %1588 = vst.msk [vmem:[#allocation5 + $0x20] sm:$0xff] %vm237, %v1569
    %1589 = vst.msk [vmem:[#allocation5 + $0x28] sm:$0xff] %vm237, %v1571
    %1590 = vst.msk [vmem:[#allocation5 + $0x30] sm:$0xff] %vm237, %v1573
    %1591 = vst.msk [vmem:[#allocation5 + $0x38] sm:$0xff] %vm237, %v1575
    %v1592 = vld [vmem:[#allocation4 + $0x2] sm:$0xff]
    %v1593 = vld [vmem:[#allocation4 + $0xa] sm:$0xff]
    %v1594 = vld [vmem:[#allocation4 + $0x12] sm:$0xff]
    %v1595 = vld [vmem:[#allocation4 + $0x1a] sm:$0xff]
    %v1596 = vld [vmem:[#allocation4 + $0x22] sm:$0xff]
    %v1597 = vld [vmem:[#allocation4 + $0x2a] sm:$0xff]
    %v1598 = vld [vmem:[#allocation4 + $0x32] sm:$0xff]
    %v1599 = vld [vmem:[#allocation4 + $0x3a] sm:$0xff]
    %1608 = vrot.lane.b32.xlu0 %v1592, 16
    %v1609 = vpop.permute.xlu0 %1608
    %1610 = vrot.lane.b32.xlu0 %v1593, 16
    %v1611 = vpop.permute.xlu0 %1610
    %1612 = vrot.lane.b32.xlu0 %v1594, 16
    %v1613 = vpop.permute.xlu0 %1612
    %1614 = vrot.lane.b32.xlu0 %v1595, 16
    %v1615 = vpop.permute.xlu0 %1614
    %1616 = vrot.lane.b32.xlu0 %v1596, 16
    %v1617 = vpop.permute.xlu0 %1616
    %1618 = vrot.lane.b32.xlu0 %v1597, 16
    %v1619 = vpop.permute.xlu0 %1618
    %1620 = vrot.lane.b32.xlu0 %v1598, 16
    %v1621 = vpop.permute.xlu0 %1620
    %1622 = vrot.lane.b32.xlu0 %v1599, 16
    %v1623 = vpop.permute.xlu0 %1622
    %1632 = vst.msk [vmem:[#allocation5] sm:$0xff] %vm294, %v1609
    %1633 = vst.msk [vmem:[#allocation5 + $0x8] sm:$0xff] %vm294, %v1611
    %1634 = vst.msk [vmem:[#allocation5 + $0x10] sm:$0xff] %vm294, %v1613
    %1635 = vst.msk [vmem:[#allocation5 + $0x18] sm:$0xff] %vm294, %v1615
    %1636 = vst.msk [vmem:[#allocation5 + $0x20] sm:$0xff] %vm294, %v1617
    %1637 = vst.msk [vmem:[#allocation5 + $0x28] sm:$0xff] %vm294, %v1619
    %1638 = vst.msk [vmem:[#allocation5 + $0x30] sm:$0xff] %vm294, %v1621
    %1639 = vst.msk [vmem:[#allocation5 + $0x38] sm:$0xff] %vm294, %v1623
    %v1640 = vld [vmem:[#allocation4 + $0x3] sm:$0xff]
    %v1641 = vld [vmem:[#allocation4 + $0xb] sm:$0xff]
    %v1642 = vld [vmem:[#allocation4 + $0x13] sm:$0xff]
    %v1643 = vld [vmem:[#allocation4 + $0x1b] sm:$0xff]
    %v1644 = vld [vmem:[#allocation4 + $0x23] sm:$0xff]
    %v1645 = vld [vmem:[#allocation4 + $0x2b] sm:$0xff]
    %v1646 = vld [vmem:[#allocation4 + $0x33] sm:$0xff]
    %v1647 = vld [vmem:[#allocation4 + $0x3b] sm:$0xff]
    %1656 = vrot.lane.b32.xlu0 %v1640, 24
    %v1657 = vpop.permute.xlu0 %1656
    %1658 = vrot.lane.b32.xlu0 %v1641, 24
    %v1659 = vpop.permute.xlu0 %1658
    %1660 = vrot.lane.b32.xlu0 %v1642, 24
    %v1661 = vpop.permute.xlu0 %1660
    %1662 = vrot.lane.b32.xlu0 %v1643, 24
    %v1663 = vpop.permute.xlu0 %1662
    %1664 = vrot.lane.b32.xlu0 %v1644, 24
    %v1665 = vpop.permute.xlu0 %1664
    %1666 = vrot.lane.b32.xlu0 %v1645, 24
    %v1667 = vpop.permute.xlu0 %1666
    %1668 = vrot.lane.b32.xlu0 %v1646, 24
    %v1669 = vpop.permute.xlu0 %1668
    %1670 = vrot.lane.b32.xlu0 %v1647, 24
    %v1671 = vpop.permute.xlu0 %1670
    %1680 = vst.msk [vmem:[#allocation5] sm:$0xff] %vm351, %v1657
    %1681 = vst.msk [vmem:[#allocation5 + $0x8] sm:$0xff] %vm351, %v1659
    %1682 = vst.msk [vmem:[#allocation5 + $0x10] sm:$0xff] %vm351, %v1661
    %1683 = vst.msk [vmem:[#allocation5 + $0x18] sm:$0xff] %vm351, %v1663
    %1684 = vst.msk [vmem:[#allocation5 + $0x20] sm:$0xff] %vm351, %v1665
    %1685 = vst.msk [vmem:[#allocation5 + $0x28] sm:$0xff] %vm351, %v1667
    %1686 = vst.msk [vmem:[#allocation5 + $0x30] sm:$0xff] %vm351, %v1669
    %1687 = vst.msk [vmem:[#allocation5 + $0x38] sm:$0xff] %vm351, %v1671
    %v1688 = vld [vmem:[#allocation4 + $0x4] sm:$0xff]
    %v1689 = vld [vmem:[#allocation4 + $0xc] sm:$0xff]
    %v1690 = vld [vmem:[#allocation4 + $0x14] sm:$0xff]
    %v1691 = vld [vmem:[#allocation4 + $0x1c] sm:$0xff]
    %v1692 = vld [vmem:[#allocation4 + $0x24] sm:$0xff]
    %v1693 = vld [vmem:[#allocation4 + $0x2c] sm:$0xff]
    %v1694 = vld [vmem:[#allocation4 + $0x34] sm:$0xff]
    %v1695 = vld [vmem:[#allocation4 + $0x3c] sm:$0xff]
    %1704 = vrot.lane.b32.xlu0 %v1688, 32
    %v1705 = vpop.permute.xlu0 %1704
    %1706 = vrot.lane.b32.xlu0 %v1689, 32
    %v1707 = vpop.permute.xlu0 %1706
    %1708 = vrot.lane.b32.xlu0 %v1690, 32
    %v1709 = vpop.permute.xlu0 %1708
    %1710 = vrot.lane.b32.xlu0 %v1691, 32
    %v1711 = vpop.permute.xlu0 %1710
    %1712 = vrot.lane.b32.xlu0 %v1692, 32
    %v1713 = vpop.permute.xlu0 %1712
    %1714 = vrot.lane.b32.xlu0 %v1693, 32
    %v1715 = vpop.permute.xlu0 %1714
    %1716 = vrot.lane.b32.xlu0 %v1694, 32
    %v1717 = vpop.permute.xlu0 %1716
    %1718 = vrot.lane.b32.xlu0 %v1695, 32
    %v1719 = vpop.permute.xlu0 %1718
    %1728 = vst.msk [vmem:[#allocation5] sm:$0xff] %vm408, %v1705
    %1729 = vst.msk [vmem:[#allocation5 + $0x8] sm:$0xff] %vm408, %v1707
    %1730 = vst.msk [vmem:[#allocation5 + $0x10] sm:$0xff] %vm408, %v1709
    %1731 = vst.msk [vmem:[#allocation5 + $0x18] sm:$0xff] %vm408, %v1711
    %1732 = vst.msk [vmem:[#allocation5 + $0x20] sm:$0xff] %vm408, %v1713
    %1733 = vst.msk [vmem:[#allocation5 + $0x28] sm:$0xff] %vm408, %v1715
    %1734 = vst.msk [vmem:[#allocation5 + $0x30] sm:$0xff] %vm408, %v1717
    %1735 = vst.msk [vmem:[#allocation5 + $0x38] sm:$0xff] %vm408, %v1719
    %v1736 = vld [vmem:[#allocation5] sm:$0xff]
    %v1737 = vld [vmem:[#allocation5 + $0x8] sm:$0xff]
    %v1738 = vld [vmem:[#allocation5 + $0x10] sm:$0xff]
    %v1739 = vld [vmem:[#allocation5 + $0x18] sm:$0xff]
    %v1740 = vld [vmem:[#allocation5 + $0x20] sm:$0xff]
    %v1741 = vld [vmem:[#allocation5 + $0x28] sm:$0xff]
    %v1742 = vld [vmem:[#allocation5 + $0x30] sm:$0xff]
    %v1743 = vld [vmem:[#allocation5 + $0x38] sm:$0xff]
    %v1745 = vsel %vm431, %v1736, 0
    %v1748 = vsel %vm431, %v1737, 0
    %v1751 = vsel %vm431, %v1738, 0
    %v1754 = vsel %vm431, %v1739, 0
    %v1757 = vsel %vm431, %v1740, 0
    %v1760 = vsel %vm431, %v1741, 0
    %v1763 = vsel %vm431, %v1742, 0
    %v1766 = vsel %vm431, %v1743, 0
    %1768 = vmatprep.subr.mxu0 0.0
    %1769 = vmatpush1.msra.mxu0 %v50
    %1770 = vmatprep.subr.mxu0 0.0
    %1771 = vmatpush1.msra.mxu0 %v51
    %1772 = vmatprep.subr.mxu0 0.0
    %1773 = vmatpush1.msra.mxu0 %v52
    %1774 = vmatprep.subr.mxu0 0.0
    %1775 = vmatpush1.msra.mxu0 %v53
    %1776 = vmatprep.subr.mxu0 0.0
    %1777 = vmatpush1.msra.mxu0 %v54
    %1778 = vmatprep.subr.mxu0 0.0
    %1779 = vmatpush1.msra.mxu0 0.0
    %1780 = vmatprep.subr.mxu0 0.0
    %1781 = vmatpush1.msra.mxu0 0.0
    %1782 = vmatprep.subr.mxu0 0.0
    %1783 = vmatpush1.msra.mxu0 0.0
    %1784 = vmatprep.subr.mxu0 0.0
    %1785 = vmatpush1.msra.mxu0 0.0
    %1786 = vmatprep.subr.mxu0 0.0
    %1787 = vmatpush1.msra.mxu0 0.0
    %1788 = vmatprep.subr.mxu0 0.0
    %1789 = vmatpush1.msra.mxu0 0.0
    %1790 = vmatprep.subr.mxu0 0.0
    %1791 = vmatpush1.msra.mxu0 0.0
    %1792 = vmatprep.subr.mxu0 0.0
    %1793 = vmatpush1.msra.mxu0 0.0
    %1794 = vmatprep.subr.mxu0 0.0
    %1795 = vmatpush1.msra.mxu0 0.0
    %1796 = vmatprep.subr.mxu0 0.0
    %1797 = vmatpush1.msra.mxu0 0.0
    %1798 = vmatprep.subr.mxu0 0.0
    %1799 = vmatpush1.msra.mxu0 0.0
    %1800 = vmatprep.subr.mxu0 0.0
    %1801 = vmatpush1.msra.mxu0 0.0
    %1802 = vmatprep.subr.mxu0 0.0
    %1803 = vmatpush1.msra.mxu0 0.0
    %1804 = vmatprep.subr.mxu0 0.0
    %1805 = vmatpush1.msra.mxu0 0.0
    %1806 = vmatprep.subr.mxu0 0.0
    %1807 = vmatpush1.msra.mxu0 0.0
    %1808 = vmatprep.subr.mxu0 0.0
    %1809 = vmatpush1.msra.mxu0 0.0
    %1810 = vmatprep.subr.mxu0 0.0
    %1811 = vmatpush1.msra.mxu0 0.0
    %1812 = vmatprep.subr.mxu0 0.0
    %1813 = vmatpush1.msra.mxu0 0.0
    %1814 = vmatprep.subr.mxu0 0.0
    %1815 = vmatpush1.msra.mxu0 0.0
    %1816 = vmatprep.subr.mxu0 0.0
    %1817 = vmatpush1.msra.mxu0 0.0
    %1818 = vmatprep.subr.mxu0 0.0
    %1819 = vmatpush1.msra.mxu0 0.0
    %1820 = vmatprep.subr.mxu0 0.0
    %1821 = vmatpush1.msra.mxu0 0.0
    %1822 = vmatprep.subr.mxu0 0.0
    %1823 = vmatpush1.msra.mxu0 0.0
    %1824 = vmatprep.subr.mxu0 0.0
    %1825 = vmatpush1.msra.mxu0 0.0
    %1826 = vmatprep.subr.mxu0 0.0
    %1827 = vmatpush1.msra.mxu0 0.0
    %1828 = vmatprep.subr.mxu0 0.0
    %1829 = vmatpush1.msra.mxu0 0.0
    %1830 = vmatprep.subr.mxu0 0.0
    %1831 = vmatpush1.msra.mxu0 0.0
    %1832 = vmatprep.mubr.f32.mxu0 0.0
    %1833 = vmatmul.mubr.f32.gmra.mrb[0].mxu0 %v1745
    %v1834 = vpop.f32.mrb[0].mxu0
    %v1835 = vadd.f32 %v825, %v1834
    %v1836 = vpop.f32.mrb[0].mxu0
    %1837 = vmatprep.mubr.f32.mxu0 0.0
    %1838 = vmatmul.mubr.f32.gmra.mrb[0].mxu0 %v1748
    %v1839 = vpop.f32.mrb[0].mxu0
    %v1840 = vadd.f32 %v825, %v1839
    %v1841 = vpop.f32.mrb[0].mxu0
    %1842 = vmatprep.mubr.f32.mxu0 0.0
    %1843 = vmatmul.mubr.f32.gmra.mrb[0].mxu0 %v1751
    %v1844 = vpop.f32.mrb[0].mxu0
    %v1845 = vadd.f32 %v825, %v1844
    %v1846 = vpop.f32.mrb[0].mxu0
    %1847 = vmatprep.mubr.f32.mxu0 0.0
    %1848 = vmatmul.mubr.f32.gmra.mrb[0].mxu0 %v1754
    %v1849 = vpop.f32.mrb[0].mxu0
    %v1850 = vadd.f32 %v825, %v1849
    %v1851 = vpop.f32.mrb[0].mxu0
    %1852 = vmatprep.mubr.f32.mxu0 0.0
    %1853 = vmatmul.mubr.f32.gmra.mrb[0].mxu0 %v1757
    %v1854 = vpop.f32.mrb[0].mxu0
    %v1855 = vadd.f32 %v825, %v1854
    %v1856 = vpop.f32.mrb[0].mxu0
    %1857 = vmatprep.mubr.f32.mxu0 0.0
    %1858 = vmatmul.mubr.f32.gmra.mrb[0].mxu0 %v1760
    %v1859 = vpop.f32.mrb[0].mxu0
    %v1860 = vadd.f32 %v825, %v1859
    %v1861 = vpop.f32.mrb[0].mxu0
    %1862 = vmatprep.mubr.f32.mxu0 0.0
    %1863 = vmatmul.mubr.f32.gmra.mrb[0].mxu0 %v1763
    %v1864 = vpop.f32.mrb[0].mxu0
    %v1865 = vadd.f32 %v825, %v1864
    %v1866 = vpop.f32.mrb[0].mxu0
    %1867 = vmatprep.mubr.f32.mxu0 0.0
    %1868 = vmatmul.mubr.f32.gmra.mrb[0].mxu0 %v1766
    %v1869 = vpop.f32.mrb[0].mxu0
    %v1870 = vadd.f32 %v825, %v1869
    %v1871 = vpop.f32.mrb[0].mxu0
    %1872 = vdwg.mxu0
    %1873 = vst.msk [vmem:[#allocation6] sm:$0xff] %vm149, %v1071
    %1874 = vst.msk [vmem:[#allocation6 + $0x8] sm:$0xff] %vm149, %v1072
    %1875 = vst.msk [vmem:[#allocation6 + $0x10] sm:$0xff] %vm149, %v1073
    %1876 = vst.msk [vmem:[#allocation6 + $0x18] sm:$0xff] %vm149, %v1074
    %1877 = vst.msk [vmem:[#allocation6 + $0x20] sm:$0xff] %vm149, %v1075
    %1878 = vst.msk [vmem:[#allocation6 + $0x28] sm:$0xff] %vm149, %v1076
    %1879 = vst.msk [vmem:[#allocation6 + $0x30] sm:$0xff] %vm149, %v1077
    %1880 = vst.msk [vmem:[#allocation6 + $0x38] sm:$0xff] %vm149, %v1078
    %1881 = vst.msk [vmem:[#allocation6 + $0x40] sm:$0xff] %vm149, %v1079
    %1882 = vst.msk [vmem:[#allocation6 + $0x48] sm:$0xff] %vm149, %v1080
    %1883 = vst.msk [vmem:[#allocation6 + $0x50] sm:$0xff] %vm149, %v1081
    %1884 = vst.msk [vmem:[#allocation6 + $0x58] sm:$0xff] %vm149, %v1082
    %1885 = vst.msk [vmem:[#allocation6 + $0x60] sm:$0xff] %vm149, %v1083
    %1886 = vst.msk [vmem:[#allocation6 + $0x68] sm:$0xff] %vm149, %v1084
    %1887 = vst.msk [vmem:[#allocation6 + $0x70] sm:$0xff] %vm149, %v1085
    %1888 = vst.msk [vmem:[#allocation6 + $0x78] sm:$0xff] %vm149, %v1086
    %v1889 = vld [vmem:[#allocation6] ss:$2 sm:$0xff]
    %v1890 = vld [vmem:[%s973] ss:$2 sm:$0xff]
    %v1891 = vld [vmem:[%s975] ss:$2 sm:$0xff]
    %v1892 = vld [vmem:[%s977] ss:$2 sm:$0xff]
    %v1893 = vld [vmem:[%s979] ss:$2 sm:$0xff]
    %v1894 = vld [vmem:[%s981] ss:$2 sm:$0xff]
    %v1895 = vld [vmem:[%s983] ss:$2 sm:$0xff]
    %v1896 = vld [vmem:[%s985] ss:$2 sm:$0xff]
    %v1897 = vld [vmem:[%s987] ss:$2 sm:$0xff]
    %v1898 = vld [vmem:[%s989] ss:$2 sm:$0xff]
    %v1899 = vld [vmem:[%s991] ss:$2 sm:$0xff]
    %v1900 = vld [vmem:[%s993] ss:$2 sm:$0xff]
    %v1901 = vld [vmem:[%s995] ss:$2 sm:$0xff]
    %v1902 = vld [vmem:[%s997] ss:$2 sm:$0xff]
    %v1903 = vld [vmem:[%s999] ss:$2 sm:$0xff]
    %v1904 = vld [vmem:[%s1001] ss:$2 sm:$0xff]
    %v1905 = vmax.f32 %v1889, %v1897
    %v1906 = vmax.f32 %v1890, %v1898
    %v1907 = vmax.f32 %v1891, %v1899
    %v1908 = vmax.f32 %v1892, %v1900
    %v1909 = vmax.f32 %v1893, %v1901
    %v1910 = vmax.f32 %v1894, %v1902
    %v1911 = vmax.f32 %v1895, %v1903
    %v1912 = vmax.f32 %v1896, %v1904
    %v1913 = vadd.f32 %v1835, %v1905
    %v1914 = vadd.f32 %v1840, %v1906
    %v1915 = vadd.f32 %v1845, %v1907
    %v1916 = vadd.f32 %v1850, %v1908
    %v1917 = vadd.f32 %v1855, %v1909
    %v1918 = vadd.f32 %v1860, %v1910
    %v1919 = vadd.f32 %v1865, %v1911
    %v1920 = vadd.f32 %v1870, %v1912
    %1921 = vxpose.xlu0.b32.start [1/16] %v1913, 128
    %1922 = vxpose.xlu0.b32.cont [2/16] %v1914, 128
    %1923 = vxpose.xlu0.b32.cont [3/16] %v1915, 128
    %1924 = vxpose.xlu0.b32.cont [4/16] %v1916, 128
    %1925 = vxpose.xlu0.b32.cont [5/16] %v1917, 128
    %1926 = vxpose.xlu0.b32.cont [6/16] %v1918, 128
    %1927 = vxpose.xlu0.b32.cont [7/16] %v1919, 128
    %1928 = vxpose.xlu0.b32.cont [8/16] %v1920, 128
    %1929 = vxpose.xlu0.b32.cont [9/16] 0.0, 128
    %1930 = vxpose.xlu0.b32.cont [10/16] 0.0, 128
    %1931 = vxpose.xlu0.b32.cont [11/16] 0.0, 128
    %1932 = vxpose.xlu0.b32.cont [12/16] 0.0, 128
    %1933 = vxpose.xlu0.b32.cont [13/16] 0.0, 128
    %1934 = vxpose.xlu0.b32.cont [14/16] 0.0, 128
    %1935 = vxpose.xlu0.b32.cont [15/16] 0.0, 128
    %1936 = vxpose.xlu0.b32.end [16/16] 0.0, 128
    %v1937 = vpop.trf.xlu0
    %v1938 = vpop.trf.xlu0
    %v1939 = vpop.trf.xlu0
    %v1940 = vpop.trf.xlu0
    %v1941 = vpop.trf.xlu0
    %v1942 = vpop.trf.xlu0
    %v1943 = vpop.trf.xlu0
    %v1944 = vpop.trf.xlu0
    %v1945 = vpop.trf.xlu0
    %v1946 = vpop.trf.xlu0
    %v1947 = vpop.trf.xlu0
    %v1948 = vpop.trf.xlu0
    %v1949 = vpop.trf.xlu0
    %v1950 = vpop.trf.xlu0
    %v1951 = vpop.trf.xlu0
    %v1952 = vpop.trf.xlu0
    %s1953 = scalar_lea.vmem [#allocation7], 8
    %1954 = vst.msk [vmem:[%s1953] sm:$0xff] %vm1051, %v1937
    // Predicated region
    $region38: #{tpu_custom_call.1} parent=1 // pred_check
      _
    $region39: #{tpu_custom_call.1} parent=1 // pred_check_branch
      %1956 = sbr.rel (0) target = $region41
    $region40: #{tpu_custom_call.1} parent=1 // pred_region
      %s1958 = ssub.s32 256, 256
      %1959 = vsyncadd [#allocation8], %s1958
      %s1960 = sshll.u32 [#allocation7], 4
      %s1961 = int_to_ptr.vmem [resolvable:$true] %s1960
      %1966 = dma.vmem_to_hbm [thread:$0]  %s1961, 256, %s9, [#allocation8], 128, 128, 8
    $region41: #{tpu_custom_call.1} parent=1 // pred_fallthru
      _
    // Predicated region
    $region42: #{tpu_custom_call.1} parent=1 // pred_check
      _
    $region43: #{tpu_custom_call.1} parent=1 // pred_check_branch
      %1968 = sbr.rel (0) target = $region45
    $region44: #{tpu_custom_call.1} parent=1 // pred_region
      %1969 = dma.done [#allocation8], 256
    $region45: #{tpu_custom_call.1} parent=1 // pred_fallthru
      _
    %1970 = vsyncpa [#allocation8], 1

</llo_original>
